<compile_context>
chip_gen: v5e
topology: v5e:2x2
jax: 0.10.0
libtpu: 0.0.40
codegen_flags: <defaults>
</compile_context>

<pallas_src>
import functools

import jax
import jax.numpy as jnp
from jax.experimental import pallas as pl
from jax.experimental.pallas import tpu as pltpu

# ---------------- config (small synthetic sizes) ----------------
HIDDEN = 32              # hidden_size (256 in the reference module)
C_FPN = 16               # backbone.out_channels (256 in the torchvision FPN)
FPN_STRIDES = (4, 8, 16, 32)   # levels '0'..'3'
ROI_OUT = 2              # roi_output_size = (2, 2)
LN_EPS = 1e-5            # nn.LayerNorm default eps
VMEM_LIMIT = 32 * 1024 * 1024  # safe on v5e/v6e/v7x; usage here is far below this


# ---------------- Pallas kernels ----------------

def _backbone_kernel(init_ref, fin_ref, *refs):
    # refs = [ah_0, r_0, b_0, ..., ah_3, r_3, b_3, out_0, ..., out_3]
    # init/fin blocks: (1, H, W*3) channel-minor slabs.  Subtract is fused here so the
    # difference image never round-trips through HBM.
    n_lvl = len(FPN_STRIDES)
    d = init_ref[0] - fin_ref[0]                                     # (H, W*3)
    for l in range(n_lvl):
        ah_ref, r_ref, b_ref = refs[3 * l: 3 * l + 3]
        o_ref = refs[3 * n_lvl + l]
        # row pooling:   (h_l, H) @ (H, W*3)        -> (h_l, W*3)
        t = jnp.dot(ah_ref[...], d, preferred_element_type=jnp.float32)
        # col pooling + 1x1 conv folded into one matrix: (h_l, W*3) @ (W*3, w_l*C_FPN)
        y = jnp.dot(t, r_ref[...], preferred_element_type=jnp.float32) + b_ref[...]
        o_ref[...] = jnp.maximum(y, 0.0)[None]                       # (1, h_l, w_l*C_FPN)


def _roi_kernel(bidx_ref, bins_ref, *refs):
    # refs = [feat_level0 .. feat_level3, out]; feature blocks are (1, fh, fw, C) NHWC.
    # Output row layout: (level, ph, pw, channel), lane-dense 4*4*C = 256 lanes.
    feat_refs = refs[:-1]
    o_ref = refs[-1]
    k = pl.program_id(0)
    pieces = []
    for l, f_ref in enumerate(feat_refs):
        f = f_ref[0]                                                 # (fh, fw, C)
        fh, fw, c = f.shape
        hh = jax.lax.broadcasted_iota(jnp.int32, (fh, fw, c), 0)
        ww = jax.lax.broadcasted_iota(jnp.int32, (fh, fw, c), 1)
        base = 8 * l
        for ph in range(ROI_OUT):
            for pw in range(ROI_OUT):
                hs = bins_ref[k, base + ph]
                he = bins_ref[k, base + 2 + ph]
                ws = bins_ref[k, base + 4 + pw]
                we = bins_ref[k, base + 6 + pw]
                mask = (hh >= hs) & (hh < he) & (ww >= ws) & (ww < we)
                m = jnp.max(jnp.where(mask, f, -jnp.inf), axis=0)    # (fw, C)
                m = jnp.max(m, axis=0, keepdims=True)                # (1, C)
                empty = jnp.logical_or(he <= hs, we <= ws)           # torchvision: empty bin -> 0
                pieces.append(jnp.where(empty, 0.0, m))
    o_ref[...] = jnp.concatenate(pieces, axis=1)                     # (1, 256)


def _head_kernel(roi_ref, box_ref, isin_ref,
                 sfw_ref, sfb_ref, sfg_ref, sfbt_ref,
                 pw_ref, pb_ref, pg_ref, pbt_ref,
                 ti_ref, tf_ref, o_ref, *, img_h, img_w, nbatch):
    def linear_ln(x, w, b, g, beta):
        y = jnp.dot(x, w, preferred_element_type=jnp.float32) + b
        mu = jnp.mean(y, axis=-1, keepdims=True)
        var = jnp.mean(jnp.square(y - mu), axis=-1, keepdims=True)
        return (y - mu) * jax.lax.rsqrt(var + LN_EPS) * g + beta

    # _encode_pos: normalize + clamp + width/height/area -> Linear(7, H) + LayerNorm
    bx = box_ref[...]                                                # (K, 5)
    x1 = jnp.clip(bx[:, 1:2] / img_w, 0.0, 1.0)
    y1 = jnp.clip(bx[:, 2:3] / img_h, 0.0, 1.0)
    x2 = jnp.clip(bx[:, 3:4] / img_w, 0.0, 1.0)
    y2 = jnp.clip(bx[:, 4:5] / img_h, 0.0, 1.0)
    wd = x2 - x1
    ht = y2 - y1
    pos = jnp.concatenate([x1, y1, x2, y2, wd, ht, wd * ht], axis=1)  # (K, 7)
    pe = linear_ln(pos, pw_ref[...], pb_ref[...], pg_ref[...], pbt_ref[...])

    # scale_fusion: Conv2d(c_total, H, k=(2,2)) + Flatten + LayerNorm == matmul on the
    # flattened ROI row + LayerNorm.
    sf = linear_ln(roi_ref[...], sfw_ref[...], sfb_ref[...], sfg_ref[...], sfbt_ref[...])

    # + pos + type embedding (init_type for init boxes, fin_type for fin boxes)
    isin = isin_ref[...]                                             # (K, 1)
    fused = sf + pe + isin * ti_ref[...] + (1.0 - isin) * tf_ref[...]  # (K, H)

    # _agg_objs: per-batch max over init rows / fin rows, concatenated.
    bcol = bx[:, 0:1]                                                # batch-index column
    rows = []
    for b in range(nbatch):
        in_b = bcol == float(b)
        mi = jnp.logical_and(in_b, isin > 0.5)
        mf = jnp.logical_and(in_b, isin <= 0.5)
        imax = jnp.max(jnp.where(mi, fused, -jnp.inf), axis=0, keepdims=True)
        fmax = jnp.max(jnp.where(mf, fused, -jnp.inf), axis=0, keepdims=True)
        has_i = jnp.max(mi.astype(jnp.float32), axis=0, keepdims=True)
        has_f = jnp.max(mf.astype(jnp.float32), axis=0, keepdims=True)
        imax = jnp.where(has_i > 0.0, imax, 0.0)   # empty-batch guard (torch would error)
        fmax = jnp.where(has_f > 0.0, fmax, 0.0)
        rows.append(jnp.concatenate([imax, fmax], axis=1))           # (1, 2H)
    o_ref[...] = jnp.concatenate(rows, axis=0)                       # (B, 2H)


# ---------------- wrappers ----------------

def backbone(params, init_r, fin_r, img_h, img_w):
    # TODO(synk): resnet_fpn_backbone (torchvision) is an external module; replaced by a
    # deterministic stand-in (stride-s average pool + 1x1 conv + ReLU per level) that
    # preserves the {'0'..'3'} -> (B, C_FPN, H/s, W/s)-shaped output contract.
    b = init_r.shape[0]
    n_lvl = len(FPN_STRIDES)
    args = [init_r, fin_r]
    in_specs = [pl.BlockSpec((1, img_h, img_w * 3), lambda i: (i, 0, 0)),
                pl.BlockSpec((1, img_h, img_w * 3), lambda i: (i, 0, 0))]
    out_shapes, out_specs, hw = [], [], []
    for l, s in enumerate(FPN_STRIDES):
        h, w = img_h // s, img_w // s
        hw.append((h, w))
        ah = jnp.repeat(jnp.eye(h, dtype=jnp.float32), s, axis=1) / float(s)   # (h, H)
        aw = jnp.repeat(jnp.eye(w, dtype=jnp.float32), s, axis=0) / float(s)   # (W, w)
        # column pooling and the 1x1 conv folded into one (W*3, w*C_FPN) matrix.
        r = jnp.kron(aw, params["fpn_w"][l])
        brow = jnp.tile(params["fpn_b"][l], (w,))[None, :]                     # (1, w*C_FPN)
        args += [ah, r, brow]
        in_specs += [pl.BlockSpec((h, img_h), lambda i: (0, 0)),
                     pl.BlockSpec((img_w * 3, w * C_FPN), lambda i: (0, 0)),
                     pl.BlockSpec((1, w * C_FPN), lambda i: (0, 0))]
        out_shapes.append(jax.ShapeDtypeStruct((b, h, w * C_FPN), jnp.float32))
        out_specs.append(pl.BlockSpec((1, h, w * C_FPN), lambda i: (i, 0, 0)))
    outs = pl.pallas_call(
        _backbone_kernel,
        out_shape=tuple(out_shapes),
        grid_spec=pltpu.PrefetchScalarGridSpec(
            num_scalar_prefetch=0,
            grid=(b,),
            in_specs=in_specs,
            out_specs=out_specs),
        compiler_params=pltpu.CompilerParams(dimension_semantics=("parallel",),
                                             vmem_limit_bytes=VMEM_LIMIT),
    )(*args)
    # (B, h, w*C) -> NHWC (B, h, w, C): trivial minor-dim split, feeds the ROI kernel.
    return [outs[l].reshape(b, hw[l][0], hw[l][1], C_FPN) for l in range(n_lvl)]


def _roi_bins_packed(boxes, img_h, img_w):
    """torchvision RoIPool bin boundaries for every level, packed into (K, 8*n_levels) int32."""
    cols = []
    p = jnp.arange(ROI_OUT, dtype=jnp.float32)
    for l, s in enumerate(FPN_STRIDES):
        fh, fw = img_h // s, img_w // s
        scale = 4.0 + 2.0 * l   # matches the reference: RoIPool(spatial_scale=4 + 2*int(level))
        x1 = jnp.round(boxes[:, 1] * scale).astype(jnp.int32)
        y1 = jnp.round(boxes[:, 2] * scale).astype(jnp.int32)
        x2 = jnp.round(boxes[:, 3] * scale).astype(jnp.int32)
        y2 = jnp.round(boxes[:, 4] * scale).astype(jnp.int32)
        roi_w = jnp.maximum(x2 - x1 + 1, 1).astype(jnp.float32)[:, None]
        roi_h = jnp.maximum(y2 - y1 + 1, 1).astype(jnp.float32)[:, None]
        bin_h = roi_h / ROI_OUT
        bin_w = roi_w / ROI_OUT
        hs = jnp.clip(jnp.floor(p[None] * bin_h).astype(jnp.int32) + y1[:, None], 0, fh)
        he = jnp.clip(jnp.ceil((p[None] + 1.0) * bin_h).astype(jnp.int32) + y1[:, None], 0, fh)
        ws = jnp.clip(jnp.floor(p[None] * bin_w).astype(jnp.int32) + x1[:, None], 0, fw)
        we = jnp.clip(jnp.ceil((p[None] + 1.0) * bin_w).astype(jnp.int32) + x1[:, None], 0, fw)
        cols.append(jnp.concatenate([hs, he, ws, we], axis=1))       # (K, 8)
    return jnp.concatenate(cols, axis=1).astype(jnp.int32)           # (K, 32)


def roi_pool_all(feats, boxes, img_h, img_w):
    k = boxes.shape[0]
    n_lvl = len(FPN_STRIDES)
    out_dim = n_lvl * ROI_OUT * ROI_OUT * C_FPN                      # 256
    bins = _roi_bins_packed(boxes, img_h, img_w)
    bidx = boxes[:, 0].astype(jnp.int32)
    in_specs = [pl.BlockSpec((1,) + f.shape[1:],
                             lambda i, bidx_ref, bins_ref: (bidx_ref[i], 0, 0, 0))
                for f in feats]
    return pl.pallas_call(
        _roi_kernel,
        out_shape=jax.ShapeDtypeStruct((k, out_dim), jnp.float32),
        grid_spec=pltpu.PrefetchScalarGridSpec(
            num_scalar_prefetch=2,
            grid=(k,),
            in_specs=in_specs,
            out_specs=pl.BlockSpec((1, out_dim), lambda i, *_: (i, 0))),
        compiler_params=pltpu.CompilerParams(dimension_semantics=("parallel",),
                                             vmem_limit_bytes=VMEM_LIMIT),
    )(bidx, bins, *feats)


def head(params, roi_flat, boxes, is_init, nbatch, img_h, img_w):
    kernel = functools.partial(_head_kernel, img_h=float(img_h), img_w=float(img_w),
                               nbatch=int(nbatch))
    return pl.pallas_call(
        kernel,
        out_shape=jax.ShapeDtypeStruct((int(nbatch), 2 * HIDDEN), jnp.float32),
    )(roi_flat, boxes, is_init,
      params["sf_w"], params["sf_b"][None, :], params["sf_ln_g"][None, :], params["sf_ln_b"][None, :],
      params["pos_w"], params["pos_b"][None, :], params["pos_ln_g"][None, :], params["pos_ln_b"][None, :],
      params["init_type"], params["fin_type"])


# ---------------- forward ----------------

def detector_encoder_forward(params, init, fin, init_boxes, fin_boxes, n_init, n_fin):
    # n_init / n_fin are implied by the boxes' batch-index column (consistent inputs
    # assumed, as in the reference); aggregation groups by that column.
    del n_init, n_fin
    b, _, img_h, img_w = init.shape

    # channel-minor image slabs (B, H, W*3) so the backbone kernel is pure 2-D matmuls.
    init_r = jnp.transpose(init, (0, 2, 3, 1)).reshape(b, img_h, img_w * 3)
    fin_r = jnp.transpose(fin, (0, 2, 3, 1)).reshape(b, img_h, img_w * 3)
    feats = backbone(params, init_r, fin_r, img_h, img_w)

    # one combined, batch-sorted box list -> ROI / scale_fusion / pos_encode run once.
    n_i = init_boxes.shape[0]
    n_f = fin_boxes.shape[0]
    boxes_all = jnp.concatenate([init_boxes, fin_boxes], axis=0)
    is_init = jnp.concatenate([jnp.ones((n_i, 1), jnp.float32),
                               jnp.zeros((n_f, 1), jnp.float32)], axis=0)
    order = jnp.argsort(boxes_all[:, 0], stable=True)     # batch-sorted -> block reuse in ROI
    boxes_s = boxes_all[order]
    is_init_s = is_init[order]

    roi_flat = roi_pool_all(feats, boxes_s, img_h, img_w)            # (K, 256) lane-dense
    return head(params, roi_flat, boxes_s, is_init_s, b, img_h, img_w)   # (B, 2*HIDDEN)


def init_params(key):
    ks = jax.random.split(key, 12)
    c_total = C_FPN * len(FPN_STRIDES)
    return {
        # stand-in FPN projection: 1x1 conv (3 -> C_FPN) per level
        "fpn_w": [0.2 * jax.random.normal(ks[i], (3, C_FPN), jnp.float32) for i in range(4)],
        "fpn_b": [0.1 * jax.random.normal(ks[4 + i], (C_FPN,), jnp.float32) for i in range(4)],
        # scale_fusion Conv2d(c_total, H, k=(2,2)): stored pre-flattened with rows in the
        # kernel's (level, ph, pw, channel) ROI order.
        "sf_w": 0.05 * jax.random.normal(ks[8], (c_total * ROI_OUT * ROI_OUT, HIDDEN), jnp.float32),
        "sf_b": jnp.zeros((HIDDEN,), jnp.float32),
        "sf_ln_g": jnp.ones((HIDDEN,), jnp.float32),
        "sf_ln_b": jnp.zeros((HIDDEN,), jnp.float32),
        # pos_encode: Linear(7, HIDDEN) + LayerNorm
        "pos_w": 0.3 * jax.random.normal(ks[9], (7, HIDDEN), jnp.float32),
        "pos_b": jnp.zeros((HIDDEN,), jnp.float32),
        "pos_ln_g": jnp.ones((HIDDEN,), jnp.float32),
        "pos_ln_b": jnp.zeros((HIDDEN,), jnp.float32),
        # init_type / fin_type ~ normal_(zeros(1, HIDDEN))
        "init_type": jax.random.normal(ks[10], (1, HIDDEN), jnp.float32),
        "fin_type": jax.random.normal(ks[11], (1, HIDDEN), jnp.float32),
    }


if __name__ == "__main__":
    key = jax.random.PRNGKey(0)
    kp, ki, kf, kb1, kb2 = jax.random.split(key, 5)
    params = init_params(kp)

    B, H_IMG, W_IMG = 2, 64, 64
    n_init = (3, 2)            # boxes per image (<= MAX_BOX = 11)
    n_fin = (2, 3)

    init_img = jax.random.normal(ki, (B, 3, H_IMG, W_IMG), jnp.float32)
    fin_img = jax.random.normal(kf, (B, 3, H_IMG, W_IMG), jnp.float32)

    def make_boxes(k, counts):
        tot = sum(counts)
        k1, k2 = jax.random.split(k)
        xy1 = jax.random.uniform(k1, (tot, 2), minval=0.0, maxval=3.0)
        wh = jax.random.uniform(k2, (tot, 2), minval=1.0, maxval=4.0)
        xy2 = jnp.minimum(xy1 + wh, jnp.array([W_IMG - 1.0, H_IMG - 1.0]))
        bidx = jnp.concatenate(
            [jnp.full((c, 1), float(bi), jnp.float32) for bi, c in enumerate(counts)], axis=0)
        return jnp.concatenate([bidx, xy1, xy2], axis=1).astype(jnp.float32)

    init_boxes = make_boxes(kb1, n_init)   # (5, 5): [batch_idx, x1, y1, x2, y2]
    fin_boxes = make_boxes(kb2, n_fin)     # (5, 5)

    out = detector_encoder_forward(params, init_img, fin_img,
                                   init_boxes, fin_boxes, n_init, n_fin)
    out = jax.block_until_ready(out)
    assert out.shape == (B, 2 * HIDDEN), out.shape
    assert bool(jnp.all(jnp.isfinite(out)))
    print("KERNEL_OK")
</pallas_src>

<mosaic_0001>
module attributes {stable_mosaic.version = 11 : i64} {
  func.func @_backbone_kernel(%arg0: i32, %arg1: memref<1x64x192xf32, #tpu.memory_space<vmem>>, %arg2: memref<1x64x192xf32, #tpu.memory_space<vmem>>, %arg3: memref<16x64xf32, #tpu.memory_space<vmem>>, %arg4: memref<192x256xf32, #tpu.memory_space<vmem>>, %arg5: memref<1x256xf32, #tpu.memory_space<vmem>>, %arg6: memref<8x64xf32, #tpu.memory_space<vmem>>, %arg7: memref<192x128xf32, #tpu.memory_space<vmem>>, %arg8: memref<1x128xf32, #tpu.memory_space<vmem>>, %arg9: memref<4x64xf32, #tpu.memory_space<vmem>>, %arg10: memref<192x64xf32, #tpu.memory_space<vmem>>, %arg11: memref<1x64xf32, #tpu.memory_space<vmem>>, %arg12: memref<2x64xf32, #tpu.memory_space<vmem>>, %arg13: memref<192x32xf32, #tpu.memory_space<vmem>>, %arg14: memref<1x32xf32, #tpu.memory_space<vmem>>, %arg15: memref<1x16x256xf32, #tpu.memory_space<vmem>>, %arg16: memref<1x8x128xf32, #tpu.memory_space<vmem>>, %arg17: memref<1x4x64xf32, #tpu.memory_space<vmem>>, %arg18: memref<1x2x32xf32, #tpu.memory_space<vmem>>) attributes {dimension_semantics = [#tpu.dimension_semantics<parallel>], iteration_bounds = array<i64: 2>, scalar_prefetch = 0 : i64, scratch_operands = 0 : i64, tpu.core_type = #tpu.core_type<tc>, window_params = [{transform_indices = @transform_0, window_bounds = array<i64: 1, 64, 192>}, {transform_indices = @transform_1, window_bounds = array<i64: 1, 64, 192>}, {pipeline_mode = #tpu.pipeline_mode<synchronous>, transform_indices = @transform_2, window_bounds = array<i64: 16, 64>}, {pipeline_mode = #tpu.pipeline_mode<synchronous>, transform_indices = @transform_3, window_bounds = array<i64: 192, 256>}, {pipeline_mode = #tpu.pipeline_mode<synchronous>, transform_indices = @transform_4, window_bounds = array<i64: 1, 256>}, {pipeline_mode = #tpu.pipeline_mode<synchronous>, transform_indices = @transform_5, window_bounds = array<i64: 8, 64>}, {pipeline_mode = #tpu.pipeline_mode<synchronous>, transform_indices = @transform_6, window_bounds = array<i64: 192, 128>}, {pipeline_mode = #tpu.pipeline_mode<synchronous>, transform_indices = @transform_7, window_bounds = array<i64: 1, 128>}, {pipeline_mode = #tpu.pipeline_mode<synchronous>, transform_indices = @transform_8, window_bounds = array<i64: 4, 64>}, {pipeline_mode = #tpu.pipeline_mode<synchronous>, transform_indices = @transform_9, window_bounds = array<i64: 192, 64>}, {pipeline_mode = #tpu.pipeline_mode<synchronous>, transform_indices = @transform_10, window_bounds = array<i64: 1, 64>}, {pipeline_mode = #tpu.pipeline_mode<synchronous>, transform_indices = @transform_11, window_bounds = array<i64: 2, 64>}, {pipeline_mode = #tpu.pipeline_mode<synchronous>, transform_indices = @transform_12, window_bounds = array<i64: 192, 32>}, {pipeline_mode = #tpu.pipeline_mode<synchronous>, transform_indices = @transform_13, window_bounds = array<i64: 1, 32>}, {transform_indices = @transform_14, window_bounds = array<i64: 1, 16, 256>}, {transform_indices = @transform_15, window_bounds = array<i64: 1, 8, 128>}, {transform_indices = @transform_16, window_bounds = array<i64: 1, 4, 64>}, {transform_indices = @transform_17, window_bounds = array<i64: 1, 2, 32>}]} {
    %c0 = arith.constant 0 : index
    %c0_0 = arith.constant 0 : index
    %c0_1 = arith.constant 0 : index
    %0 = vector.load %arg1[%c0, %c0_0, %c0_1] : memref<1x64x192xf32, #tpu.memory_space<vmem>>, vector<1x64x192xf32>
    %1 = vector.shape_cast %0 : vector<1x64x192xf32> to vector<64x192xf32>
    %c0_2 = arith.constant 0 : index
    %c0_3 = arith.constant 0 : index
    %c0_4 = arith.constant 0 : index
    %2 = vector.load %arg2[%c0_2, %c0_3, %c0_4] : memref<1x64x192xf32, #tpu.memory_space<vmem>>, vector<1x64x192xf32>
    %3 = vector.shape_cast %2 : vector<1x64x192xf32> to vector<64x192xf32>
    %4 = arith.subf %1, %3 : vector<64x192xf32>
    %c0_5 = arith.constant 0 : index
    %c0_6 = arith.constant 0 : index
    %5 = vector.load %arg3[%c0_5, %c0_6] : memref<16x64xf32, #tpu.memory_space<vmem>>, vector<16x64xf32>
    %cst = arith.constant dense<0.000000e+00> : vector<16x192xf32>
    %6 = tpu.matmul %5, %4, %cst {dimension_numbers = #tpu.dot_dimension_numbers<[1], [0], [0], [1], [0, 0, 1, 1], [], []>} : vector<16x64xf32>, vector<64x192xf32>, vector<16x192xf32> -> vector<16x192xf32>
    %c0_7 = arith.constant 0 : index
    %c0_8 = arith.constant 0 : index
    %7 = vector.load %arg4[%c0_7, %c0_8] : memref<192x256xf32, #tpu.memory_space<vmem>>, vector<192x256xf32>
    %cst_9 = arith.constant dense<0.000000e+00> : vector<16x256xf32>
    %8 = tpu.matmul %6, %7, %cst_9 {dimension_numbers = #tpu.dot_dimension_numbers<[1], [0], [0], [1], [0, 0, 1, 1], [], []>} : vector<16x192xf32>, vector<192x256xf32>, vector<16x256xf32> -> vector<16x256xf32>
    %c0_10 = arith.constant 0 : index
    %c0_11 = arith.constant 0 : index
    %9 = vector.load %arg5[%c0_10, %c0_11] : memref<1x256xf32, #tpu.memory_space<vmem>>, vector<1x256xf32>
    %10 = vector.broadcast %9 : vector<1x256xf32> to vector<16x256xf32>
    %11 = arith.addf %8, %10 : vector<16x256xf32>
    %cst_12 = arith.constant 0.000000e+00 : f32
    %12 = vector.broadcast %cst_12 : f32 to vector<16x256xf32>
    %13 = arith.maximumf %11, %12 : vector<16x256xf32>
    %14 = vector.shape_cast %13 : vector<16x256xf32> to vector<1x16x256xf32>
    %c0_13 = arith.constant 0 : index
    %c0_14 = arith.constant 0 : index
    %c0_15 = arith.constant 0 : index
    %15 = vector.load %arg15[%c0_13, %c0_14, %c0_15] : memref<1x16x256xf32, #tpu.memory_space<vmem>>, vector<1x16x256xf32>
    tpu.vector_store %arg15[%c0_13, %c0_14, %c0_15], %14 {strides = array<i32>} : memref<1x16x256xf32, #tpu.memory_space<vmem>>, vector<1x16x256xf32>,
    %c0_16 = arith.constant 0 : index
    %c0_17 = arith.constant 0 : index
    %16 = vector.load %arg6[%c0_16, %c0_17] : memref<8x64xf32, #tpu.memory_space<vmem>>, vector<8x64xf32>
    %cst_18 = arith.constant dense<0.000000e+00> : vector<8x192xf32>
    %17 = tpu.matmul %16, %4, %cst_18 {dimension_numbers = #tpu.dot_dimension_numbers<[1], [0], [0], [1], [0, 0, 1, 1], [], []>} : vector<8x64xf32>, vector<64x192xf32>, vector<8x192xf32> -> vector<8x192xf32>
    %c0_19 = arith.constant 0 : index
    %c0_20 = arith.constant 0 : index
    %18 = vector.load %arg7[%c0_19, %c0_20] : memref<192x128xf32, #tpu.memory_space<vmem>>, vector<192x128xf32>
    %cst_21 = arith.constant dense<0.000000e+00> : vector<8x128xf32>
    %19 = tpu.matmul %17, %18, %cst_21 {dimension_numbers = #tpu.dot_dimension_numbers<[1], [0], [0], [1], [0, 0, 1, 1], [], []>} : vector<8x192xf32>, vector<192x128xf32>, vector<8x128xf32> -> vector<8x128xf32>
    %c0_22 = arith.constant 0 : index
    %c0_23 = arith.constant 0 : index
    %20 = vector.load %arg8[%c0_22, %c0_23] : memref<1x128xf32, #tpu.memory_space<vmem>>, vector<1x128xf32>
    %21 = vector.broadcast %20 : vector<1x128xf32> to vector<8x128xf32>
    %22 = arith.addf %19, %21 : vector<8x128xf32>
    %cst_24 = arith.constant 0.000000e+00 : f32
    %23 = vector.broadcast %cst_24 : f32 to vector<8x128xf32>
    %24 = arith.maximumf %22, %23 : vector<8x128xf32>
    %25 = vector.shape_cast %24 : vector<8x128xf32> to vector<1x8x128xf32>
    %c0_25 = arith.constant 0 : index
    %c0_26 = arith.constant 0 : index
    %c0_27 = arith.constant 0 : index
    %26 = vector.load %arg16[%c0_25, %c0_26, %c0_27] : memref<1x8x128xf32, #tpu.memory_space<vmem>>, vector<1x8x128xf32>
    tpu.vector_store %arg16[%c0_25, %c0_26, %c0_27], %25 {strides = array<i32>} : memref<1x8x128xf32, #tpu.memory_space<vmem>>, vector<1x8x128xf32>,
    %c0_28 = arith.constant 0 : index
    %c0_29 = arith.constant 0 : index
    %27 = vector.load %arg9[%c0_28, %c0_29] : memref<4x64xf32, #tpu.memory_space<vmem>>, vector<4x64xf32>
    %cst_30 = arith.constant dense<0.000000e+00> : vector<4x192xf32>
    %28 = tpu.matmul %27, %4, %cst_30 {dimension_numbers = #tpu.dot_dimension_numbers<[1], [0], [0], [1], [0, 0, 1, 1], [], []>} : vector<4x64xf32>, vector<64x192xf32>, vector<4x192xf32> -> vector<4x192xf32>
    %c0_31 = arith.constant 0 : index
    %c0_32 = arith.constant 0 : index
    %29 = vector.load %arg10[%c0_31, %c0_32] : memref<192x64xf32, #tpu.memory_space<vmem>>, vector<192x64xf32>
    %cst_33 = arith.constant dense<0.000000e+00> : vector<4x64xf32>
    %30 = tpu.matmul %28, %29, %cst_33 {dimension_numbers = #tpu.dot_dimension_numbers<[1], [0], [0], [1], [0, 0, 1, 1], [], []>} : vector<4x192xf32>, vector<192x64xf32>, vector<4x64xf32> -> vector<4x64xf32>
    %c0_34 = arith.constant 0 : index
    %c0_35 = arith.constant 0 : index
    %31 = vector.load %arg11[%c0_34, %c0_35] : memref<1x64xf32, #tpu.memory_space<vmem>>, vector<1x64xf32>
    %32 = vector.broadcast %31 : vector<1x64xf32> to vector<4x64xf32>
    %33 = arith.addf %30, %32 : vector<4x64xf32>
    %cst_36 = arith.constant 0.000000e+00 : f32
    %34 = vector.broadcast %cst_36 : f32 to vector<4x64xf32>
    %35 = arith.maximumf %33, %34 : vector<4x64xf32>
    %36 = vector.shape_cast %35 : vector<4x64xf32> to vector<1x4x64xf32>
    %c0_37 = arith.constant 0 : index
    %c0_38 = arith.constant 0 : index
    %c0_39 = arith.constant 0 : index
    %37 = vector.load %arg17[%c0_37, %c0_38, %c0_39] : memref<1x4x64xf32, #tpu.memory_space<vmem>>, vector<1x4x64xf32>
    tpu.vector_store %arg17[%c0_37, %c0_38, %c0_39], %36 {strides = array<i32>} : memref<1x4x64xf32, #tpu.memory_space<vmem>>, vector<1x4x64xf32>,
    %c0_40 = arith.constant 0 : index
    %c0_41 = arith.constant 0 : index
    %38 = vector.load %arg12[%c0_40, %c0_41] : memref<2x64xf32, #tpu.memory_space<vmem>>, vector<2x64xf32>
    %cst_42 = arith.constant dense<0.000000e+00> : vector<2x192xf32>
    %39 = tpu.matmul %38, %4, %cst_42 {dimension_numbers = #tpu.dot_dimension_numbers<[1], [0], [0], [1], [0, 0, 1, 1], [], []>} : vector<2x64xf32>, vector<64x192xf32>, vector<2x192xf32> -> vector<2x192xf32>
    %c0_43 = arith.constant 0 : index
    %c0_44 = arith.constant 0 : index
    %40 = vector.load %arg13[%c0_43, %c0_44] : memref<192x32xf32, #tpu.memory_space<vmem>>, vector<192x32xf32>
    %cst_45 = arith.constant dense<0.000000e+00> : vector<2x32xf32>
    %41 = tpu.matmul %39, %40, %cst_45 {dimension_numbers = #tpu.dot_dimension_numbers<[1], [0], [0], [1], [0, 0, 1, 1], [], []>} : vector<2x192xf32>, vector<192x32xf32>, vector<2x32xf32> -> vector<2x32xf32>
    %c0_46 = arith.constant 0 : index
    %c0_47 = arith.constant 0 : index
    %42 = vector.load %arg14[%c0_46, %c0_47] : memref<1x32xf32, #tpu.memory_space<vmem>>, vector<1x32xf32>
    %43 = vector.broadcast %42 : vector<1x32xf32> to vector<2x32xf32>
    %44 = arith.addf %41, %43 : vector<2x32xf32>
    %cst_48 = arith.constant 0.000000e+00 : f32
    %45 = vector.broadcast %cst_48 : f32 to vector<2x32xf32>
    %46 = arith.maximumf %44, %45 : vector<2x32xf32>
    %47 = vector.shape_cast %46 : vector<2x32xf32> to vector<1x2x32xf32>
    %c0_49 = arith.constant 0 : index
    %c0_50 = arith.constant 0 : index
    %c0_51 = arith.constant 0 : index
    %48 = vector.load %arg18[%c0_49, %c0_50, %c0_51] : memref<1x2x32xf32, #tpu.memory_space<vmem>>, vector<1x2x32xf32>
    tpu.vector_store %arg18[%c0_49, %c0_50, %c0_51], %47 {strides = array<i32>} : memref<1x2x32xf32, #tpu.memory_space<vmem>>, vector<1x2x32xf32>,
    return
  }
  func.func @transform_0(%arg0: i32) -> (i32, i32, i32) {
    %c0_i32 = arith.constant 0 : i32
    %c0_i32_0 = arith.constant 0 : i32
    %c0_i32_1 = arith.constant 0 : i32
    return %arg0, %c0_i32, %c0_i32_0 : i32, i32, i32
  }
  func.func @transform_1(%arg0: i32) -> (i32, i32, i32) {
    %c0_i32 = arith.constant 0 : i32
    %c0_i32_0 = arith.constant 0 : i32
    %c0_i32_1 = arith.constant 0 : i32
    return %arg0, %c0_i32, %c0_i32_0 : i32, i32, i32
  }
  func.func @transform_2(%arg0: i32) -> (i32, i32) {
    %c0_i32 = arith.constant 0 : i32
    %c0_i32_0 = arith.constant 0 : i32
    %c0_i32_1 = arith.constant 0 : i32
    return %c0_i32, %c0_i32_0 : i32, i32
  }
  func.func @transform_3(%arg0: i32) -> (i32, i32) {
    %c0_i32 = arith.constant 0 : i32
    %c0_i32_0 = arith.constant 0 : i32
    %c0_i32_1 = arith.constant 0 : i32
    return %c0_i32, %c0_i32_0 : i32, i32
  }
  func.func @transform_4(%arg0: i32) -> (i32, i32) {
    %c0_i32 = arith.constant 0 : i32
    %c0_i32_0 = arith.constant 0 : i32
    %c0_i32_1 = arith.constant 0 : i32
    return %c0_i32, %c0_i32_0 : i32, i32
  }
  func.func @transform_5(%arg0: i32) -> (i32, i32) {
    %c0_i32 = arith.constant 0 : i32
    %c0_i32_0 = arith.constant 0 : i32
    %c0_i32_1 = arith.constant 0 : i32
    return %c0_i32, %c0_i32_0 : i32, i32
  }
  func.func @transform_6(%arg0: i32) -> (i32, i32) {
    %c0_i32 = arith.constant 0 : i32
    %c0_i32_0 = arith.constant 0 : i32
    %c0_i32_1 = arith.constant 0 : i32
    return %c0_i32, %c0_i32_0 : i32, i32
  }
  func.func @transform_7(%arg0: i32) -> (i32, i32) {
    %c0_i32 = arith.constant 0 : i32
    %c0_i32_0 = arith.constant 0 : i32
    %c0_i32_1 = arith.constant 0 : i32
    return %c0_i32, %c0_i32_0 : i32, i32
  }
  func.func @transform_8(%arg0: i32) -> (i32, i32) {
    %c0_i32 = arith.constant 0 : i32
    %c0_i32_0 = arith.constant 0 : i32
    %c0_i32_1 = arith.constant 0 : i32
    return %c0_i32, %c0_i32_0 : i32, i32
  }
  func.func @transform_9(%arg0: i32) -> (i32, i32) {
    %c0_i32 = arith.constant 0 : i32
    %c0_i32_0 = arith.constant 0 : i32
    %c0_i32_1 = arith.constant 0 : i32
    return %c0_i32, %c0_i32_0 : i32, i32
  }
  func.func @transform_10(%arg0: i32) -> (i32, i32) {
    %c0_i32 = arith.constant 0 : i32
    %c0_i32_0 = arith.constant 0 : i32
    %c0_i32_1 = arith.constant 0 : i32
    return %c0_i32, %c0_i32_0 : i32, i32
  }
  func.func @transform_11(%arg0: i32) -> (i32, i32) {
    %c0_i32 = arith.constant 0 : i32
    %c0_i32_0 = arith.constant 0 : i32
    %c0_i32_1 = arith.constant 0 : i32
    return %c0_i32, %c0_i32_0 : i32, i32
  }
  func.func @transform_12(%arg0: i32) -> (i32, i32) {
    %c0_i32 = arith.constant 0 : i32
    %c0_i32_0 = arith.constant 0 : i32
    %c0_i32_1 = arith.constant 0 : i32
    return %c0_i32, %c0_i32_0 : i32, i32
  }
  func.func @transform_13(%arg0: i32) -> (i32, i32) {
    %c0_i32 = arith.constant 0 : i32
    %c0_i32_0 = arith.constant 0 : i32
    %c0_i32_1 = arith.constant 0 : i32
    return %c0_i32, %c0_i32_0 : i32, i32
  }
  func.func @transform_14(%arg0: i32) -> (i32, i32, i32) {
    %c0_i32 = arith.constant 0 : i32
    %c0_i32_0 = arith.constant 0 : i32
    %c0_i32_1 = arith.constant 0 : i32
    return %arg0, %c0_i32, %c0_i32_0 : i32, i32, i32
  }
  func.func @transform_15(%arg0: i32) -> (i32, i32, i32) {
    %c0_i32 = arith.constant 0 : i32
    %c0_i32_0 = arith.constant 0 : i32
    %c0_i32_1 = arith.constant 0 : i32
    return %arg0, %c0_i32, %c0_i32_0 : i32, i32, i32
  }
  func.func @transform_16(%arg0: i32) -> (i32, i32, i32) {
    %c0_i32 = arith.constant 0 : i32
    %c0_i32_0 = arith.constant 0 : i32
    %c0_i32_1 = arith.constant 0 : i32
    return %arg0, %c0_i32, %c0_i32_0 : i32, i32, i32
  }
  func.func @transform_17(%arg0: i32) -> (i32, i32, i32) {
    %c0_i32 = arith.constant 0 : i32
    %c0_i32_0 = arith.constant 0 : i32
    %c0_i32_1 = arith.constant 0 : i32
    return %arg0, %c0_i32, %c0_i32_0 : i32, i32, i32
  }
}

</mosaic_0001>

<llo_original>
// kernel: tpu_custom_call.1
$region0: #{tpu_custom_call.1}
  #allocation0 [shape = 'u32[]', space=smem, size = 0x4, offset = 0x4, fixed_abs, tag = 'smem constant byte address 0x4 - core index']
  #allocation1 [shape = 'u32[72,128]{1,0:T(1,128)}', space=vmem, size = 0x9000, scoped, tag = 'internal scratch']
  %s0 = inlined_call_operand.hbm [shape: f32[2,64,192], index: 0, kind: input, shape index: {}]
  %s1 = inlined_call_operand.hbm [shape: f32[2,64,192], index: 1, kind: input, shape index: {}]
  %s2 = inlined_call_operand.vmem [shape: f32[16,64], index: 2, kind: input, shape index: {}]
  %s3 = inlined_call_operand.vmem [shape: f32[192,256], index: 3, kind: input, shape index: {}]
  %s4 = inlined_call_operand.vmem [shape: f32[1,256], index: 4, kind: input, shape index: {}]
  %s5 = inlined_call_operand.vmem [shape: f32[8,64], index: 5, kind: input, shape index: {}]
  %s6 = inlined_call_operand.hbm [shape: f32[192,128], index: 6, kind: input, shape index: {}]
  %s7 = inlined_call_operand.vmem [shape: f32[1,128], index: 7, kind: input, shape index: {}]
  %s8 = inlined_call_operand.vmem [shape: f32[4,64], index: 8, kind: input, shape index: {}]
  %s9 = inlined_call_operand.vmem [shape: f32[192,64], index: 9, kind: input, shape index: {}]
  %s10 = inlined_call_operand.vmem [shape: f32[1,64], index: 10, kind: input, shape index: {}]
  %s11 = inlined_call_operand.vmem [shape: f32[2,64], index: 11, kind: input, shape index: {}]
  %s12 = inlined_call_operand.vmem [shape: f32[192,32], index: 12, kind: input, shape index: {}]
  %s13 = inlined_call_operand.vmem [shape: f32[1,32], index: 13, kind: input, shape index: {}]
  %s14 = inlined_call_operand.hbm [shape: f32[2,16,256], index: 14, kind: output, shape index: {0}]
  %s15 = inlined_call_operand.hbm [shape: f32[2,8,128], index: 15, kind: output, shape index: {1}]
  %s16 = inlined_call_operand.hbm [shape: f32[2,4,64], index: 16, kind: output, shape index: {2}]
  %s17 = inlined_call_operand.hbm [shape: f32[2,2,32], index: 17, kind: output, shape index: {3}]
  %18 = xla_tuple %s14, %s15, %s16, %s17
  %s19 = sld [smem:[#allocation0]]
  $region125: #{tpu_custom_call.1} parent=0
    _
  %s21 = ssub.s32 1, %s19
  %s22 = scalar_select 0, %s21, %s19
  $region1: #{tpu_custom_call.1} parent=0
    #allocation2 [shape = 'u8[131072]{0}', space=vmem, size = 0x20000, scoped, tag = 'input window, operand 0']
    #allocation3 [shape = 's32[2]{0}', space=sflag, size = 0x8, scoped, tag = 'scoped memory for tpu_custom_call.1']
    #allocation4 [shape = 's32[2]{0}', space=sflag, size = 0x8, scoped, tag = 'scoped memory for tpu_custom_call.1']
    #allocation5 [shape = 'u8[131072]{0}', space=vmem, size = 0x20000, scoped, tag = 'input window, operand 1']
    #allocation6 [shape = 's32[2]{0}', space=sflag, size = 0x8, scoped, tag = 'scoped memory for tpu_custom_call.1']
    #allocation7 [shape = 'u8[98304]{0}', space=vmem, size = 0x18000, scoped, tag = 'input window, operand 6, single buffered']
    #allocation8 [shape = 'u8[32768]{0}', space=vmem, size = 0x8000, scoped, tag = 'output window, operand 0']
    #allocation9 [shape = 'u8[8192]{0}', space=vmem, size = 0x2000, scoped, tag = 'output window, operand 1']
    #allocation10 [shape = 's32[2]{0}', space=sflag, size = 0x8, scoped, tag = 'scoped memory for tpu_custom_call.1']
    #allocation11 [shape = 'u8[4096]{0}', space=vmem, size = 0x1000, scoped, tag = 'output window, operand 2']
    #allocation12 [shape = 'u8[2048]{0}', space=vmem, size = 0x800, scoped, tag = 'output window, operand 3']
    #allocation13 [shape = 's32[2]{0}', space=sflag, size = 0x8, scoped, tag = 'scoped memory for tpu_custom_call.1']
    %23 = vsyncpa [#allocation3], 0
    %s24 = scalar_lea.sflag [#allocation3], 1
    %25 = vsyncpa %s24, 0
    %26 = vsyncpa [#allocation6], 0
    %s27 = scalar_lea.sflag [#allocation6], 1
    %28 = vsyncpa %s27, 0
    %29 = vsyncpa [#allocation4], 0
    %s30 = scalar_lea.sflag [#allocation4], 1
    %31 = vsyncpa %s30, 0
    %32 = vsyncpa [#allocation10], 0
    %s33 = scalar_lea.sflag [#allocation10], 1
    %34 = vsyncpa %s33, 0
    %35 = vsyncpa [#allocation13], 0
    %s36 = scalar_lea.sflag [#allocation13], 1
    %37 = vsyncpa %s36, 0
    loop: start=0, step=1, limit=4
    $region2: #{tpu_custom_call.1} parent=1 // loop_pre_header
      _
    $region3: #{tpu_custom_call.1} parent=1 // loop_header
      %s39 = sphi 0, %s43
      %p40 = scmp.ge.s32.totalorder %s39, 4
      %s49 = sphi 0, %s51
      %s52 = sphi 0, %s49
      %s53 = sphi 0, %s52
      %s69 = sphi 0, %s53
      %s75 = sphi 0, %s77
      %s78 = sphi 0, %s75
      %s79 = sphi 0, %s78
      %s95 = sphi 0, %s79
      %s99 = sphi 0, %s99
      %s101 = sphi 0, %s99
      %s102 = sphi 0, %s101
      %s116 = sphi 0, %s102
      %s120 = sphi 0, %s120
      %s122 = sphi 0, %s120
      %s123 = sphi 0, %s122
      %s137 = sphi 0, %s123
      %s141 = sphi 0, %s141
      %s143 = sphi 0, %s141
      %s144 = sphi 0, %s143
      %s158 = sphi 0, %s144
      %s162 = sphi 0, %s162
      %s164 = sphi 0, %s162
      %s165 = sphi 0, %s164
      %s179 = sphi 0, %s165
      %s183 = sphi 0, %s183
      %s185 = sphi 0, %s183
      %s186 = sphi 0, %s185
      %s200 = sphi 0, %s186
      %s204 = sphi 0, %s204
      %s206 = sphi 0, %s204
      %s207 = sphi 0, %s206
      %s221 = sphi 0, %s207
      %s225 = sphi 0, %s225
      %s227 = sphi 0, %s225
      %s228 = sphi 0, %s227
      %s242 = sphi 0, %s228
      %s246 = sphi 0, %s246
      %s248 = sphi 0, %s246
      %s249 = sphi 0, %s248
      %s263 = sphi 0, %s249
      %s267 = sphi 0, %s267
      %s269 = sphi 0, %s267
      %s270 = sphi 0, %s269
      %s284 = sphi 0, %s270
      %s288 = sphi 0, %s288
      %s290 = sphi 0, %s288
      %s291 = sphi 0, %s290
      %s305 = sphi 0, %s291
      %s309 = sphi 0, %s309
      %s311 = sphi 0, %s309
      %s312 = sphi 0, %s311
      %s326 = sphi 0, %s312
      %s330 = sphi 0, %s330
      %s332 = sphi 0, %s330
      %s333 = sphi 0, %s332
      %s347 = sphi 0, %s333
      %s353 = sphi 0, %s355
      %s356 = sphi 0, %s353
      %s357 = sphi 0, %s356
      %s373 = sphi 0, %s357
      %s379 = sphi 0, %s381
      %s382 = sphi 0, %s379
      %s383 = sphi 0, %s382
      %s399 = sphi 0, %s383
      %s405 = sphi 0, %s407
      %s408 = sphi 0, %s405
      %s409 = sphi 0, %s408
      %s425 = sphi 0, %s409
      %s431 = sphi 0, %s433
      %s434 = sphi 0, %s431
      %s435 = sphi 0, %s434
      %s451 = sphi 0, %s435
    $region4: #{tpu_custom_call.1} parent=1 // loop_header_branch
      %42 = sbr.rel (%p40) target = $region8
    $region5: #{tpu_custom_call.1} parent=1 // loop_body
      %s44 = ssub.s32 %s39, 1
      %s45 = ssub.s32 %s39, 2
      %s46 = sadd.s32 %s39, 1
      %s47 = ssub.s32 %s39, %s46
      %p48 = scmp.eq.s32.totalorder %s47, 0
      %s50 = sadd.s32 %s49, 1
      %s51 = scalar_select %p48, %s49, %s50
      %p54 = pneg %p48
      %p55 = scmp.eq.s32.totalorder %s39, 1
      %p56 = por %p54, %p55
      %p57 = scmp.ne.s32.totalorder %s49, %s52
      %p58 = scmp.eq.s32.totalorder %s39, 0
      %p59 = por %p57, %p58
      %p60 = scmp.ne.s32.totalorder %s49, %s52
      %p61 = scmp.eq.s32.totalorder %s44, 1
      %p62 = por %p60, %p61
      %p63 = scmp.ne.s32.totalorder %s52, %s53
      %p64 = scmp.eq.s32.totalorder %s44, 0
      %p65 = por %p63, %p64
      %p66 = scmp.ne.s32.totalorder %s52, %s53
      %p67 = scmp.eq.s32.totalorder %s45, 1
      %p68 = por %p66, %p67
      %p70 = scmp.ne.s32.totalorder %s53, %s69
      %p71 = scmp.eq.s32.totalorder %s45, 0
      %p72 = por %p70, %p71
      %s73 = ssub.s32 %s39, %s46
      %p74 = scmp.eq.s32.totalorder %s73, 0
      %s76 = sadd.s32 %s75, 1
      %s77 = scalar_select %p74, %s75, %s76
      %p80 = pneg %p74
      %p81 = scmp.eq.s32.totalorder %s39, 1
      %p82 = por %p80, %p81
      %p83 = scmp.ne.s32.totalorder %s75, %s78
      %p84 = scmp.eq.s32.totalorder %s39, 0
      %p85 = por %p83, %p84
      %p86 = scmp.ne.s32.totalorder %s75, %s78
      %p87 = scmp.eq.s32.totalorder %s44, 1
      %p88 = por %p86, %p87
      %p89 = scmp.ne.s32.totalorder %s78, %s79
      %p90 = scmp.eq.s32.totalorder %s44, 0
      %p91 = por %p89, %p90
      %p92 = scmp.ne.s32.totalorder %s78, %s79
      %p93 = scmp.eq.s32.totalorder %s45, 1
      %p94 = por %p92, %p93
      %p96 = scmp.ne.s32.totalorder %s79, %s95
      %p97 = scmp.eq.s32.totalorder %s45, 0
      %p98 = por %p96, %p97
      %s100 = sadd.s32 %s99, 1
      %p103 = scmp.eq.s32.totalorder %s39, 1
      %p104 = scmp.ne.s32.totalorder %s99, %s101
      %p105 = scmp.eq.s32.totalorder %s39, 0
      %p106 = por %p104, %p105
      %p107 = scmp.ne.s32.totalorder %s99, %s101
      %p108 = scmp.eq.s32.totalorder %s44, 1
      %p109 = por %p107, %p108
      %p110 = scmp.ne.s32.totalorder %s101, %s102
      %p111 = scmp.eq.s32.totalorder %s44, 0
      %p112 = por %p110, %p111
      %p113 = scmp.ne.s32.totalorder %s101, %s102
      %p114 = scmp.eq.s32.totalorder %s45, 1
      %p115 = por %p113, %p114
      %p117 = scmp.ne.s32.totalorder %s102, %s116
      %p118 = scmp.eq.s32.totalorder %s45, 0
      %p119 = por %p117, %p118
      %s121 = sadd.s32 %s120, 1
      %p124 = scmp.eq.s32.totalorder %s39, 1
      %p125 = scmp.ne.s32.totalorder %s120, %s122
      %p126 = scmp.eq.s32.totalorder %s39, 0
      %p127 = por %p125, %p126
      %p128 = scmp.ne.s32.totalorder %s120, %s122
      %p129 = scmp.eq.s32.totalorder %s44, 1
      %p130 = por %p128, %p129
      %p131 = scmp.ne.s32.totalorder %s122, %s123
      %p132 = scmp.eq.s32.totalorder %s44, 0
      %p133 = por %p131, %p132
      %p134 = scmp.ne.s32.totalorder %s122, %s123
      %p135 = scmp.eq.s32.totalorder %s45, 1
      %p136 = por %p134, %p135
      %p138 = scmp.ne.s32.totalorder %s123, %s137
      %p139 = scmp.eq.s32.totalorder %s45, 0
      %p140 = por %p138, %p139
      %s142 = sadd.s32 %s141, 1
      %p145 = scmp.eq.s32.totalorder %s39, 1
      %p146 = scmp.ne.s32.totalorder %s141, %s143
      %p147 = scmp.eq.s32.totalorder %s39, 0
      %p148 = por %p146, %p147
      %p149 = scmp.ne.s32.totalorder %s141, %s143
      %p150 = scmp.eq.s32.totalorder %s44, 1
      %p151 = por %p149, %p150
      %p152 = scmp.ne.s32.totalorder %s143, %s144
      %p153 = scmp.eq.s32.totalorder %s44, 0
      %p154 = por %p152, %p153
      %p155 = scmp.ne.s32.totalorder %s143, %s144
      %p156 = scmp.eq.s32.totalorder %s45, 1
      %p157 = por %p155, %p156
      %p159 = scmp.ne.s32.totalorder %s144, %s158
      %p160 = scmp.eq.s32.totalorder %s45, 0
      %p161 = por %p159, %p160
      %s163 = sadd.s32 %s162, 1
      %p166 = scmp.eq.s32.totalorder %s39, 1
      %p167 = scmp.ne.s32.totalorder %s162, %s164
      %p168 = scmp.eq.s32.totalorder %s39, 0
      %p169 = por %p167, %p168
      %p170 = scmp.ne.s32.totalorder %s162, %s164
      %p171 = scmp.eq.s32.totalorder %s44, 1
      %p172 = por %p170, %p171
      %p173 = scmp.ne.s32.totalorder %s164, %s165
      %p174 = scmp.eq.s32.totalorder %s44, 0
      %p175 = por %p173, %p174
      %p176 = scmp.ne.s32.totalorder %s164, %s165
      %p177 = scmp.eq.s32.totalorder %s45, 1
      %p178 = por %p176, %p177
      %p180 = scmp.ne.s32.totalorder %s165, %s179
      %p181 = scmp.eq.s32.totalorder %s45, 0
      %p182 = por %p180, %p181
      %s184 = sadd.s32 %s183, 1
      %p187 = scmp.eq.s32.totalorder %s39, 1
      %p188 = scmp.ne.s32.totalorder %s183, %s185
      %p189 = scmp.eq.s32.totalorder %s39, 0
      %p190 = por %p188, %p189
      %p191 = scmp.ne.s32.totalorder %s183, %s185
      %p192 = scmp.eq.s32.totalorder %s44, 1
      %p193 = por %p191, %p192
      %p194 = scmp.ne.s32.totalorder %s185, %s186
      %p195 = scmp.eq.s32.totalorder %s44, 0
      %p196 = por %p194, %p195
      %p197 = scmp.ne.s32.totalorder %s185, %s186
      %p198 = scmp.eq.s32.totalorder %s45, 1
      %p199 = por %p197, %p198
      %p201 = scmp.ne.s32.totalorder %s186, %s200
      %p202 = scmp.eq.s32.totalorder %s45, 0
      %p203 = por %p201, %p202
      %s205 = sadd.s32 %s204, 1
      %p208 = scmp.eq.s32.totalorder %s39, 1
      %p209 = scmp.ne.s32.totalorder %s204, %s206
      %p210 = scmp.eq.s32.totalorder %s39, 0
      %p211 = por %p209, %p210
      %p212 = scmp.ne.s32.totalorder %s204, %s206
      %p213 = scmp.eq.s32.totalorder %s44, 1
      %p214 = por %p212, %p213
      %p215 = scmp.ne.s32.totalorder %s206, %s207
      %p216 = scmp.eq.s32.totalorder %s44, 0
      %p217 = por %p215, %p216
      %p218 = scmp.ne.s32.totalorder %s206, %s207
      %p219 = scmp.eq.s32.totalorder %s45, 1
      %p220 = por %p218, %p219
      %p222 = scmp.ne.s32.totalorder %s207, %s221
      %p223 = scmp.eq.s32.totalorder %s45, 0
      %p224 = por %p222, %p223
      %s226 = sadd.s32 %s225, 1
      %p229 = scmp.eq.s32.totalorder %s39, 1
      %p230 = scmp.ne.s32.totalorder %s225, %s227
      %p231 = scmp.eq.s32.totalorder %s39, 0
      %p232 = por %p230, %p231
      %p233 = scmp.ne.s32.totalorder %s225, %s227
      %p234 = scmp.eq.s32.totalorder %s44, 1
      %p235 = por %p233, %p234
      %p236 = scmp.ne.s32.totalorder %s227, %s228
      %p237 = scmp.eq.s32.totalorder %s44, 0
      %p238 = por %p236, %p237
      %p239 = scmp.ne.s32.totalorder %s227, %s228
      %p240 = scmp.eq.s32.totalorder %s45, 1
      %p241 = por %p239, %p240
      %p243 = scmp.ne.s32.totalorder %s228, %s242
      %p244 = scmp.eq.s32.totalorder %s45, 0
      %p245 = por %p243, %p244
      %s247 = sadd.s32 %s246, 1
      %p250 = scmp.eq.s32.totalorder %s39, 1
      %p251 = scmp.ne.s32.totalorder %s246, %s248
      %p252 = scmp.eq.s32.totalorder %s39, 0
      %p253 = por %p251, %p252
      %p254 = scmp.ne.s32.totalorder %s246, %s248
      %p255 = scmp.eq.s32.totalorder %s44, 1
      %p256 = por %p254, %p255
      %p257 = scmp.ne.s32.totalorder %s248, %s249
      %p258 = scmp.eq.s32.totalorder %s44, 0
      %p259 = por %p257, %p258
      %p260 = scmp.ne.s32.totalorder %s248, %s249
      %p261 = scmp.eq.s32.totalorder %s45, 1
      %p262 = por %p260, %p261
      %p264 = scmp.ne.s32.totalorder %s249, %s263
      %p265 = scmp.eq.s32.totalorder %s45, 0
      %p266 = por %p264, %p265
      %s268 = sadd.s32 %s267, 1
      %p271 = scmp.eq.s32.totalorder %s39, 1
      %p272 = scmp.ne.s32.totalorder %s267, %s269
      %p273 = scmp.eq.s32.totalorder %s39, 0
      %p274 = por %p272, %p273
      %p275 = scmp.ne.s32.totalorder %s267, %s269
      %p276 = scmp.eq.s32.totalorder %s44, 1
      %p277 = por %p275, %p276
      %p278 = scmp.ne.s32.totalorder %s269, %s270
      %p279 = scmp.eq.s32.totalorder %s44, 0
      %p280 = por %p278, %p279
      %p281 = scmp.ne.s32.totalorder %s269, %s270
      %p282 = scmp.eq.s32.totalorder %s45, 1
      %p283 = por %p281, %p282
      %p285 = scmp.ne.s32.totalorder %s270, %s284
      %p286 = scmp.eq.s32.totalorder %s45, 0
      %p287 = por %p285, %p286
      %s289 = sadd.s32 %s288, 1
      %p292 = scmp.eq.s32.totalorder %s39, 1
      %p293 = scmp.ne.s32.totalorder %s288, %s290
      %p294 = scmp.eq.s32.totalorder %s39, 0
      %p295 = por %p293, %p294
      %p296 = scmp.ne.s32.totalorder %s288, %s290
      %p297 = scmp.eq.s32.totalorder %s44, 1
      %p298 = por %p296, %p297
      %p299 = scmp.ne.s32.totalorder %s290, %s291
      %p300 = scmp.eq.s32.totalorder %s44, 0
      %p301 = por %p299, %p300
      %p302 = scmp.ne.s32.totalorder %s290, %s291
      %p303 = scmp.eq.s32.totalorder %s45, 1
      %p304 = por %p302, %p303
      %p306 = scmp.ne.s32.totalorder %s291, %s305
      %p307 = scmp.eq.s32.totalorder %s45, 0
      %p308 = por %p306, %p307
      %s310 = sadd.s32 %s309, 1
      %p313 = scmp.eq.s32.totalorder %s39, 1
      %p314 = scmp.ne.s32.totalorder %s309, %s311
      %p315 = scmp.eq.s32.totalorder %s39, 0
      %p316 = por %p314, %p315
      %p317 = scmp.ne.s32.totalorder %s309, %s311
      %p318 = scmp.eq.s32.totalorder %s44, 1
      %p319 = por %p317, %p318
      %p320 = scmp.ne.s32.totalorder %s311, %s312
      %p321 = scmp.eq.s32.totalorder %s44, 0
      %p322 = por %p320, %p321
      %p323 = scmp.ne.s32.totalorder %s311, %s312
      %p324 = scmp.eq.s32.totalorder %s45, 1
      %p325 = por %p323, %p324
      %p327 = scmp.ne.s32.totalorder %s312, %s326
      %p328 = scmp.eq.s32.totalorder %s45, 0
      %p329 = por %p327, %p328
      %s331 = sadd.s32 %s330, 1
      %p334 = scmp.eq.s32.totalorder %s39, 1
      %p335 = scmp.ne.s32.totalorder %s330, %s332
      %p336 = scmp.eq.s32.totalorder %s39, 0
      %p337 = por %p335, %p336
      %p338 = scmp.ne.s32.totalorder %s330, %s332
      %p339 = scmp.eq.s32.totalorder %s44, 1
      %p340 = por %p338, %p339
      %p341 = scmp.ne.s32.totalorder %s332, %s333
      %p342 = scmp.eq.s32.totalorder %s44, 0
      %p343 = por %p341, %p342
      %p344 = scmp.ne.s32.totalorder %s332, %s333
      %p345 = scmp.eq.s32.totalorder %s45, 1
      %p346 = por %p344, %p345
      %p348 = scmp.ne.s32.totalorder %s333, %s347
      %p349 = scmp.eq.s32.totalorder %s45, 0
      %p350 = por %p348, %p349
      %s351 = ssub.s32 %s39, %s46
      %p352 = scmp.eq.s32.totalorder %s351, 0
      %s354 = sadd.s32 %s353, 1
      %s355 = scalar_select %p352, %s353, %s354
      %p358 = pneg %p352
      %p359 = scmp.eq.s32.totalorder %s39, 1
      %p360 = por %p358, %p359
      %p361 = scmp.ne.s32.totalorder %s353, %s356
      %p362 = scmp.eq.s32.totalorder %s39, 0
      %p363 = por %p361, %p362
      %p364 = scmp.ne.s32.totalorder %s353, %s356
      %p365 = scmp.eq.s32.totalorder %s44, 1
      %p366 = por %p364, %p365
      %p367 = scmp.ne.s32.totalorder %s356, %s357
      %p368 = scmp.eq.s32.totalorder %s44, 0
      %p369 = por %p367, %p368
      %p370 = scmp.ne.s32.totalorder %s356, %s357
      %p371 = scmp.eq.s32.totalorder %s45, 1
      %p372 = por %p370, %p371
      %p374 = scmp.ne.s32.totalorder %s357, %s373
      %p375 = scmp.eq.s32.totalorder %s45, 0
      %p376 = por %p374, %p375
      %s377 = ssub.s32 %s39, %s46
      %p378 = scmp.eq.s32.totalorder %s377, 0
      %s380 = sadd.s32 %s379, 1
      %s381 = scalar_select %p378, %s379, %s380
      %p384 = pneg %p378
      %p385 = scmp.eq.s32.totalorder %s39, 1
      %p386 = por %p384, %p385
      %p387 = scmp.ne.s32.totalorder %s379, %s382
      %p388 = scmp.eq.s32.totalorder %s39, 0
      %p389 = por %p387, %p388
      %p390 = scmp.ne.s32.totalorder %s379, %s382
      %p391 = scmp.eq.s32.totalorder %s44, 1
      %p392 = por %p390, %p391
      %p393 = scmp.ne.s32.totalorder %s382, %s383
      %p394 = scmp.eq.s32.totalorder %s44, 0
      %p395 = por %p393, %p394
      %p396 = scmp.ne.s32.totalorder %s382, %s383
      %p397 = scmp.eq.s32.totalorder %s45, 1
      %p398 = por %p396, %p397
      %p400 = scmp.ne.s32.totalorder %s383, %s399
      %p401 = scmp.eq.s32.totalorder %s45, 0
      %p402 = por %p400, %p401
      %s403 = ssub.s32 %s39, %s46
      %p404 = scmp.eq.s32.totalorder %s403, 0
      %s406 = sadd.s32 %s405, 1
      %s407 = scalar_select %p404, %s405, %s406
      %p410 = pneg %p404
      %p411 = scmp.eq.s32.totalorder %s39, 1
      %p412 = por %p410, %p411
      %p413 = scmp.ne.s32.totalorder %s405, %s408
      %p414 = scmp.eq.s32.totalorder %s39, 0
      %p415 = por %p413, %p414
      %p416 = scmp.ne.s32.totalorder %s405, %s408
      %p417 = scmp.eq.s32.totalorder %s44, 1
      %p418 = por %p416, %p417
      %p419 = scmp.ne.s32.totalorder %s408, %s409
      %p420 = scmp.eq.s32.totalorder %s44, 0
      %p421 = por %p419, %p420
      %p422 = scmp.ne.s32.totalorder %s408, %s409
      %p423 = scmp.eq.s32.totalorder %s45, 1
      %p424 = por %p422, %p423
      %p426 = scmp.ne.s32.totalorder %s409, %s425
      %p427 = scmp.eq.s32.totalorder %s45, 0
      %p428 = por %p426, %p427
      %s429 = ssub.s32 %s39, %s46
      %p430 = scmp.eq.s32.totalorder %s429, 0
      %s432 = sadd.s32 %s431, 1
      %s433 = scalar_select %p430, %s431, %s432
      %p436 = pneg %p430
      %p437 = scmp.eq.s32.totalorder %s39, 1
      %p438 = por %p436, %p437
      %p439 = scmp.ne.s32.totalorder %s431, %s434
      %p440 = scmp.eq.s32.totalorder %s39, 0
      %p441 = por %p439, %p440
      %p442 = scmp.ne.s32.totalorder %s431, %s434
      %p443 = scmp.eq.s32.totalorder %s44, 1
      %p444 = por %p442, %p443
      %p445 = scmp.ne.s32.totalorder %s434, %s435
      %p446 = scmp.eq.s32.totalorder %s44, 0
      %p447 = por %p445, %p446
      %p448 = scmp.ne.s32.totalorder %s434, %s435
      %p449 = scmp.eq.s32.totalorder %s45, 1
      %p450 = por %p448, %p449
      %p452 = scmp.ne.s32.totalorder %s435, %s451
      %p453 = scmp.eq.s32.totalorder %s45, 0
      %p454 = por %p452, %p453
      %p455 = scmp.le.s32.totalorder 1, %s39
      %p456 = scmp.lt.s32.totalorder %s39, 3
      %p457 = pnand %p455, %p456
      %p458 = pneg %p457
      // Predicated region
      $region9: #{tpu_custom_call.1} parent=5 // pred_check
        _
      $region10: #{tpu_custom_call.1} parent=5 // pred_check_branch
        %460 = sbr.rel (%p457) target = $region12
      $region11: #{tpu_custom_call.1} parent=5 // pred_region
        %s461 = ssub.s32 %s39, 1
        // Predicated region
        $region13: #{tpu_custom_call.1} parent=11 // pred_check
          %p462 = pneg %p112
        $region14: #{tpu_custom_call.1} parent=11 // pred_check_branch
          %464 = sbr.rel (%p462) target = $region16
        $region15: #{tpu_custom_call.1} parent=11 // pred_region
          _
        $region16: #{tpu_custom_call.1} parent=11 // pred_fallthru
          _
        // Predicated region
        $region17: #{tpu_custom_call.1} parent=11 // pred_check
          %p465 = pneg %p133
        $region18: #{tpu_custom_call.1} parent=11 // pred_check_branch
          %467 = sbr.rel (%p465) target = $region20
        $region19: #{tpu_custom_call.1} parent=11 // pred_region
          _
        $region20: #{tpu_custom_call.1} parent=11 // pred_fallthru
          _
        // Predicated region
        $region21: #{tpu_custom_call.1} parent=11 // pred_check
          %p468 = pneg %p154
        $region22: #{tpu_custom_call.1} parent=11 // pred_check_branch
          %470 = sbr.rel (%p468) target = $region24
        $region23: #{tpu_custom_call.1} parent=11 // pred_region
          _
        $region24: #{tpu_custom_call.1} parent=11 // pred_fallthru
          _
        // Predicated region
        $region25: #{tpu_custom_call.1} parent=11 // pred_check
          %p471 = pneg %p175
        $region26: #{tpu_custom_call.1} parent=11 // pred_check_branch
          %473 = sbr.rel (%p471) target = $region28
        $region27: #{tpu_custom_call.1} parent=11 // pred_region
          _
        $region28: #{tpu_custom_call.1} parent=11 // pred_fallthru
          _
        // Predicated region
        $region29: #{tpu_custom_call.1} parent=11 // pred_check
          %p474 = pneg %p196
        $region30: #{tpu_custom_call.1} parent=11 // pred_check_branch
          %476 = sbr.rel (%p474) target = $region32
        $region31: #{tpu_custom_call.1} parent=11 // pred_region
          %478 = vsyncadd [#allocation6], 0
          %s479 = sshll.u32 %s6, 4
          %s480 = int_to_ptr.hbm [resolvable:$true] %s479
          %s481 = sshll.u32 [#allocation7], 4
          %s482 = int_to_ptr.vmem [resolvable:$true] %s481
          %487 = dma.hbm_to_vmem [thread:$0]  %s480, 3072, %s482, [#allocation6], 128, 128, 8
        $region32: #{tpu_custom_call.1} parent=11 // pred_fallthru
          _
        // Predicated region
        $region33: #{tpu_custom_call.1} parent=11 // pred_check
          %p488 = pneg %p217
        $region34: #{tpu_custom_call.1} parent=11 // pred_check_branch
          %490 = sbr.rel (%p488) target = $region36
        $region35: #{tpu_custom_call.1} parent=11 // pred_region
          _
        $region36: #{tpu_custom_call.1} parent=11 // pred_fallthru
          _
        // Predicated region
        $region37: #{tpu_custom_call.1} parent=11 // pred_check
          %p491 = pneg %p238
        $region38: #{tpu_custom_call.1} parent=11 // pred_check_branch
          %493 = sbr.rel (%p491) target = $region40
        $region39: #{tpu_custom_call.1} parent=11 // pred_region
          _
        $region40: #{tpu_custom_call.1} parent=11 // pred_fallthru
          _
        // Predicated region
        $region41: #{tpu_custom_call.1} parent=11 // pred_check
          %p494 = pneg %p259
        $region42: #{tpu_custom_call.1} parent=11 // pred_check_branch
          %496 = sbr.rel (%p494) target = $region44
        $region43: #{tpu_custom_call.1} parent=11 // pred_region
          _
        $region44: #{tpu_custom_call.1} parent=11 // pred_fallthru
          _
        // Predicated region
        $region45: #{tpu_custom_call.1} parent=11 // pred_check
          %p497 = pneg %p280
        $region46: #{tpu_custom_call.1} parent=11 // pred_check_branch
          %499 = sbr.rel (%p497) target = $region48
        $region47: #{tpu_custom_call.1} parent=11 // pred_region
          _
        $region48: #{tpu_custom_call.1} parent=11 // pred_fallthru
          _
        // Predicated region
        $region49: #{tpu_custom_call.1} parent=11 // pred_check
          %p500 = pneg %p301
        $region50: #{tpu_custom_call.1} parent=11 // pred_check_branch
          %502 = sbr.rel (%p500) target = $region52
        $region51: #{tpu_custom_call.1} parent=11 // pred_region
          _
        $region52: #{tpu_custom_call.1} parent=11 // pred_fallthru
          _
        // Predicated region
        $region53: #{tpu_custom_call.1} parent=11 // pred_check
          %p503 = pneg %p322
        $region54: #{tpu_custom_call.1} parent=11 // pred_check_branch
          %505 = sbr.rel (%p503) target = $region56
        $region55: #{tpu_custom_call.1} parent=11 // pred_region
          _
        $region56: #{tpu_custom_call.1} parent=11 // pred_fallthru
          _
        // Predicated region
        $region57: #{tpu_custom_call.1} parent=11 // pred_check
          %p506 = pneg %p343
        $region58: #{tpu_custom_call.1} parent=11 // pred_check_branch
          %508 = sbr.rel (%p506) target = $region60
        $region59: #{tpu_custom_call.1} parent=11 // pred_region
          _
        $region60: #{tpu_custom_call.1} parent=11 // pred_fallthru
          _
      $region12: #{tpu_custom_call.1} parent=5 // pred_fallthru
        _
      %p509 = scmp.lt.s32.totalorder %s39, 2
      // Predicated region
      $region61: #{tpu_custom_call.1} parent=5 // pred_check
        %p510 = pneg %p509
      $region62: #{tpu_custom_call.1} parent=5 // pred_check_branch
        %512 = sbr.rel (%p510) target = $region64
      $region63: #{tpu_custom_call.1} parent=5 // pred_region
        // Predicated region
        $region65: #{tpu_custom_call.1} parent=63 // pred_check
          %p513 = pneg %p59
        $region66: #{tpu_custom_call.1} parent=63 // pred_check_branch
          %515 = sbr.rel (%p513) target = $region68
        $region67: #{tpu_custom_call.1} parent=63 // pred_region
          %s516 = sand.u32 %s49, 1
          %s517 = scalar_lea.sflag [#allocation3], %s516
          %s518 = sand.u32 %s49, 1
          %s519 = smul.addr %s518, 128
          %s520 = scalar_lea.vmem [#allocation2], %s519
          %522 = vsyncadd %s517, 0
          %s523 = smul.addr %s39, 16
          %s524 = smul.addr %s523, 8
          %s525 = scalar_lea.hbm %s0, %s524
          %s526 = sshll.u32 %s525, 4
          %s527 = int_to_ptr.hbm [resolvable:$true] %s526
          %s528 = sshll.u32 %s520, 4
          %s529 = int_to_ptr.vmem [resolvable:$true] %s528
          %534 = dma.hbm_to_vmem [thread:$0]  %s527, 2048, %s529, %s517, 256, 256, 16
        $region68: #{tpu_custom_call.1} parent=63 // pred_fallthru
          _
        // Predicated region
        $region69: #{tpu_custom_call.1} parent=63 // pred_check
          %p535 = pneg %p85
        $region70: #{tpu_custom_call.1} parent=63 // pred_check_branch
          %537 = sbr.rel (%p535) target = $region72
        $region71: #{tpu_custom_call.1} parent=63 // pred_region
          %s538 = sand.u32 %s39, 1
          %s539 = scalar_lea.sflag [#allocation6], %s538
          %s540 = sand.u32 %s75, 1
          %s541 = smul.addr %s540, 128
          %s542 = scalar_lea.vmem [#allocation5], %s541
          %544 = vsyncadd %s539, 0
          %s545 = smul.addr %s39, 16
          %s546 = smul.addr %s545, 8
          %s547 = scalar_lea.hbm %s1, %s546
          %s548 = sshll.u32 %s547, 4
          %s549 = int_to_ptr.hbm [resolvable:$true] %s548
          %s550 = sshll.u32 %s542, 4
          %s551 = int_to_ptr.vmem [resolvable:$true] %s550
          %556 = dma.hbm_to_vmem [thread:$0]  %s549, 2048, %s551, %s539, 256, 256, 16
        $region72: #{tpu_custom_call.1} parent=63 // pred_fallthru
          _
      $region64: #{tpu_custom_call.1} parent=5 // pred_fallthru
        _
      %p557 = scmp.le.s32.totalorder 1, %s39
      %p558 = scmp.lt.s32.totalorder %s39, 3
      %p559 = pnand %p557, %p558
      %p560 = pneg %p559
      // Predicated region
      $region73: #{tpu_custom_call.1} parent=5 // pred_check
        _
      $region74: #{tpu_custom_call.1} parent=5 // pred_check_branch
        %562 = sbr.rel (%p559) target = $region76
      $region75: #{tpu_custom_call.1} parent=5 // pred_region
        %s563 = ssub.s32 %s39, 1
        %s564 = sand.u32 %s52, 1
        %s565 = scalar_lea.sflag [#allocation3], %s564
        %s566 = sand.u32 %s52, 1
        %s567 = smul.addr %s566, 128
        %s568 = scalar_lea.vmem [#allocation2], %s567
        // Predicated region
        $region77: #{tpu_custom_call.1} parent=75 // pred_check
          %p569 = pneg %p65
        $region78: #{tpu_custom_call.1} parent=75 // pred_check_branch
          %571 = sbr.rel (%p569) target = $region80
        $region79: #{tpu_custom_call.1} parent=75 // pred_region
          %573 = dma.done %s565, 2048
        $region80: #{tpu_custom_call.1} parent=75 // pred_fallthru
          _
        %s574 = sand.u32 %s44, 1
        %s575 = scalar_lea.sflag [#allocation6], %s574
        %s576 = sand.u32 %s78, 1
        %s577 = smul.addr %s576, 128
        %s578 = scalar_lea.vmem [#allocation5], %s577
        // Predicated region
        $region81: #{tpu_custom_call.1} parent=75 // pred_check
          %p579 = pneg %p91
        $region82: #{tpu_custom_call.1} parent=75 // pred_check_branch
          %581 = sbr.rel (%p579) target = $region84
        $region83: #{tpu_custom_call.1} parent=75 // pred_region
          %583 = dma.done %s575, 2048
        $region84: #{tpu_custom_call.1} parent=75 // pred_fallthru
          _
        // Predicated region
        $region85: #{tpu_custom_call.1} parent=75 // pred_check
          %p584 = pneg %p196
        $region86: #{tpu_custom_call.1} parent=75 // pred_check_branch
          %586 = sbr.rel (%p584) target = $region88
        $region87: #{tpu_custom_call.1} parent=75 // pred_region
          %588 = dma.done [#allocation6], 3072
        $region88: #{tpu_custom_call.1} parent=75 // pred_fallthru
          _
        %s589 = sand.u32 %s52, 1
        %s590 = scalar_lea.sflag [#allocation3], %s589
        %s591 = sand.u32 %s52, 1
        %s592 = smul.addr %s591, 128
        %s593 = scalar_lea.vmem [#allocation2], %s592
        %p594 = pneg %p65
        %p595 = pneg %p62
        %s596 = sand.u32 %s44, 1
        %s597 = scalar_lea.sflag [#allocation6], %s596
        %s598 = sand.u32 %s78, 1
        %s599 = smul.addr %s598, 128
        %s600 = scalar_lea.vmem [#allocation5], %s599
        %p601 = pneg %p91
        %p602 = pneg %p88
        %p603 = pneg %p112
        %p604 = pneg %p109
        %p605 = pneg %p133
        %p606 = pneg %p130
        %p607 = pneg %p154
        %p608 = pneg %p151
        %p609 = pneg %p175
        %p610 = pneg %p172
        %p611 = pneg %p196
        %p612 = pneg %p193
        %p613 = pneg %p217
        %p614 = pneg %p214
        %p615 = pneg %p238
        %p616 = pneg %p235
        %p617 = pneg %p259
        %p618 = pneg %p256
        %p619 = pneg %p280
        %p620 = pneg %p277
        %p621 = pneg %p301
        %p622 = pneg %p298
        %p623 = pneg %p322
        %p624 = pneg %p319
        %p625 = pneg %p343
        %p626 = pneg %p340
        %p627 = pneg %p369
        %p628 = pneg %p366
        %s629 = sand.u32 %s356, 1
        %s630 = scalar_lea.sflag [#allocation4], %s629
        %s631 = sand.u32 %s356, 1
        %s632 = smul.addr %s631, 32
        %s633 = scalar_lea.vmem [#allocation8], %s632
        %p634 = pneg %p395
        %p635 = pneg %p392
        %s636 = sand.u32 %s44, 1
        %s637 = scalar_lea.sflag [#allocation10], %s636
        %s638 = sand.u32 %s382, 1
        %s639 = smul.addr %s638, 8
        %s640 = scalar_lea.vmem [#allocation9], %s639
        %p641 = pneg %p421
        %p642 = pneg %p418
        %s643 = sand.u32 %s44, 1
        %s644 = scalar_lea.sflag [#allocation10], %s643
        %s645 = sand.u32 %s408, 1
        %s646 = smul.addr %s645, 4
        %s647 = scalar_lea.vmem [#allocation11], %s646
        %p648 = pneg %p447
        %p649 = pneg %p444
        %s650 = sand.u32 %s434, 1
        %s651 = scalar_lea.sflag [#allocation13], %s650
        %s652 = sand.u32 %s434, 1
        %s653 = smul.addr %s652, 2
        %s654 = scalar_lea.vmem [#allocation12], %s653
        %v655 = vld [vmem:[%s568] sm:$0xff]
        %v656 = vld [vmem:[%s568 + $0x8] sm:$0xff]
        %v657 = vld [vmem:[%s568 + $0x10] sm:$0xff]
        %v658 = vld [vmem:[%s568 + $0x18] sm:$0xff]
        %v659 = vld [vmem:[%s568 + $0x20] sm:$0xff]
        %v660 = vld [vmem:[%s568 + $0x28] sm:$0xff]
        %v661 = vld [vmem:[%s568 + $0x30] sm:$0xff]
        %v662 = vld [vmem:[%s568 + $0x38] sm:$0xff]
        %v663 = vld [vmem:[%s568 + $0x40] sm:$0xff]
        %v664 = vld [vmem:[%s568 + $0x48] sm:$0xff]
        %v665 = vld [vmem:[%s568 + $0x50] sm:$0xff]
        %v666 = vld [vmem:[%s568 + $0x58] sm:$0xff]
        %v667 = vld [vmem:[%s568 + $0x60] sm:$0xff]
        %v668 = vld [vmem:[%s568 + $0x68] sm:$0xff]
        %v669 = vld [vmem:[%s568 + $0x70] sm:$0xff]
        %v670 = vld [vmem:[%s568 + $0x78] sm:$0xff]
        %v671 = vld [vmem:[%s578] sm:$0xff]
        %v672 = vld [vmem:[%s578 + $0x8] sm:$0xff]
        %v673 = vld [vmem:[%s578 + $0x10] sm:$0xff]
        %v674 = vld [vmem:[%s578 + $0x18] sm:$0xff]
        %v675 = vld [vmem:[%s578 + $0x20] sm:$0xff]
        %v676 = vld [vmem:[%s578 + $0x28] sm:$0xff]
        %v677 = vld [vmem:[%s578 + $0x30] sm:$0xff]
        %v678 = vld [vmem:[%s578 + $0x38] sm:$0xff]
        %v679 = vld [vmem:[%s578 + $0x40] sm:$0xff]
        %v680 = vld [vmem:[%s578 + $0x48] sm:$0xff]
        %v681 = vld [vmem:[%s578 + $0x50] sm:$0xff]
        %v682 = vld [vmem:[%s578 + $0x58] sm:$0xff]
        %v683 = vld [vmem:[%s578 + $0x60] sm:$0xff]
        %v684 = vld [vmem:[%s578 + $0x68] sm:$0xff]
        %v685 = vld [vmem:[%s578 + $0x70] sm:$0xff]
        %v686 = vld [vmem:[%s578 + $0x78] sm:$0xff]
        %v687 = vsub.f32 %v655, %v671
        %v688 = vsub.f32 %v656, %v672
        %v689 = vsub.f32 %v657, %v673
        %v690 = vsub.f32 %v658, %v674
        %v691 = vsub.f32 %v659, %v675
        %v692 = vsub.f32 %v660, %v676
        %v693 = vsub.f32 %v661, %v677
        %v694 = vsub.f32 %v662, %v678
        %v695 = vsub.f32 %v663, %v679
        %v696 = vsub.f32 %v664, %v680
        %v697 = vsub.f32 %v665, %v681
        %v698 = vsub.f32 %v666, %v682
        %v699 = vsub.f32 %v667, %v683
        %v700 = vsub.f32 %v668, %v684
        %v701 = vsub.f32 %v669, %v685
        %v702 = vsub.f32 %v670, %v686
        %v703 = vld [vmem:[%s2] sm:$0xff]
        %v704 = vld [vmem:[%s2 + $0x8] sm:$0xff]
        %vm705 = vcmask 523264
        %v707 = vsel %vm705, %v703, 0
        %v710 = vsel %vm705, %v704, 0
        %712 = vmatpush.msra.mxu0 0.0
        %713 = vmatpush.msra.mxu0 0.0
        %714 = vmatpush.msra.mxu0 0.0
        %715 = vmatpush.msra.mxu0 0.0
        %716 = vmatpush.msra.mxu0 0.0
        %717 = vmatpush.msra.mxu0 0.0
        %718 = vmatpush.msra.mxu0 0.0
        %719 = vmatpush.msra.mxu0 0.0
        %720 = vmatpush.msra.mxu0 %v701
        %721 = vmatpush.msra.mxu0 %v699
        %722 = vmatpush.msra.mxu0 %v697
        %723 = vmatpush.msra.mxu0 %v695
        %724 = vmatpush.msra.mxu0 %v693
        %725 = vmatpush.msra.mxu0 %v691
        %726 = vmatpush.msra.mxu0 %v689
        %727 = vmatpush.msra.mxu0 %v687
        %728 = vmatmul.f32.gmra.mxu0 %v707
        %v729 = vpop.f32.mrf.mxu0
        %v730 = vadd.f32 0.0, %v729
        %731 = vmatmul.f32.gmra.mxu0 %v710
        %v732 = vpop.f32.mrf.mxu0
        %v733 = vadd.f32 0.0, %v732
        %734 = vdwg.mxu0
        %735 = vmatpush.msra.mxu0 0.0
        %736 = vmatpush.msra.mxu0 0.0
        %737 = vmatpush.msra.mxu0 0.0
        %738 = vmatpush.msra.mxu0 0.0
        %739 = vmatpush.msra.mxu0 0.0
        %740 = vmatpush.msra.mxu0 0.0
        %741 = vmatpush.msra.mxu0 0.0
        %742 = vmatpush.msra.mxu0 0.0
        %743 = vmatpush.msra.mxu0 %v702
        %744 = vmatpush.msra.mxu0 %v700
        %745 = vmatpush.msra.mxu0 %v698
        %746 = vmatpush.msra.mxu0 %v696
        %747 = vmatpush.msra.mxu0 %v694
        %748 = vmatpush.msra.mxu0 %v692
        %749 = vmatpush.msra.mxu0 %v690
        %750 = vmatpush.msra.mxu0 %v688
        %751 = vmatmul.f32.gmra.mxu0 %v707
        %v752 = vpop.f32.mrf.mxu0
        %v753 = vadd.f32 0.0, %v752
        %754 = vmatmul.f32.gmra.mxu0 %v710
        %v755 = vpop.f32.mrf.mxu0
        %v756 = vadd.f32 0.0, %v755
        %757 = vdwg.mxu0
        %v758 = vld [vmem:[%s3] sm:$0xff]
        %v759 = vld [vmem:[%s3 + $0x8] sm:$0xff]
        %v760 = vld [vmem:[%s3 + $0x10] sm:$0xff]
        %v761 = vld [vmem:[%s3 + $0x18] sm:$0xff]
        %v762 = vld [vmem:[%s3 + $0x20] sm:$0xff]
        %v763 = vld [vmem:[%s3 + $0x28] sm:$0xff]
        %v764 = vld [vmem:[%s3 + $0x30] sm:$0xff]
        %v765 = vld [vmem:[%s3 + $0x38] sm:$0xff]
        %v766 = vld [vmem:[%s3 + $0x40] sm:$0xff]
        %v767 = vld [vmem:[%s3 + $0x48] sm:$0xff]
        %v768 = vld [vmem:[%s3 + $0x50] sm:$0xff]
        %v769 = vld [vmem:[%s3 + $0x58] sm:$0xff]
        %v770 = vld [vmem:[%s3 + $0x60] sm:$0xff]
        %v771 = vld [vmem:[%s3 + $0x68] sm:$0xff]
        %v772 = vld [vmem:[%s3 + $0x70] sm:$0xff]
        %v773 = vld [vmem:[%s3 + $0x78] sm:$0xff]
        %v774 = vld [vmem:[%s3 + $0x80] sm:$0xff]
        %v775 = vld [vmem:[%s3 + $0x88] sm:$0xff]
        %v776 = vld [vmem:[%s3 + $0x90] sm:$0xff]
        %v777 = vld [vmem:[%s3 + $0x98] sm:$0xff]
        %v778 = vld [vmem:[%s3 + $0xa0] sm:$0xff]
        %v779 = vld [vmem:[%s3 + $0xa8] sm:$0xff]
        %v780 = vld [vmem:[%s3 + $0xb0] sm:$0xff]
        %v781 = vld [vmem:[%s3 + $0xb8] sm:$0xff]
        %v782 = vld [vmem:[%s3 + $0xc0] sm:$0xff]
        %v783 = vld [vmem:[%s3 + $0xc8] sm:$0xff]
        %v784 = vld [vmem:[%s3 + $0xd0] sm:$0xff]
        %v785 = vld [vmem:[%s3 + $0xd8] sm:$0xff]
        %v786 = vld [vmem:[%s3 + $0xe0] sm:$0xff]
        %v787 = vld [vmem:[%s3 + $0xe8] sm:$0xff]
        %v788 = vld [vmem:[%s3 + $0xf0] sm:$0xff]
        %v789 = vld [vmem:[%s3 + $0xf8] sm:$0xff]
        %v790 = vld [vmem:[%s3 + $0x100] sm:$0xff]
        %v791 = vld [vmem:[%s3 + $0x108] sm:$0xff]
        %v792 = vld [vmem:[%s3 + $0x110] sm:$0xff]
        %v793 = vld [vmem:[%s3 + $0x118] sm:$0xff]
        %v794 = vld [vmem:[%s3 + $0x120] sm:$0xff]
        %v795 = vld [vmem:[%s3 + $0x128] sm:$0xff]
        %v796 = vld [vmem:[%s3 + $0x130] sm:$0xff]
        %v797 = vld [vmem:[%s3 + $0x138] sm:$0xff]
        %v798 = vld [vmem:[%s3 + $0x140] sm:$0xff]
        %v799 = vld [vmem:[%s3 + $0x148] sm:$0xff]
        %v800 = vld [vmem:[%s3 + $0x150] sm:$0xff]
        %v801 = vld [vmem:[%s3 + $0x158] sm:$0xff]
        %v802 = vld [vmem:[%s3 + $0x160] sm:$0xff]
        %v803 = vld [vmem:[%s3 + $0x168] sm:$0xff]
        %v804 = vld [vmem:[%s3 + $0x170] sm:$0xff]
        %v805 = vld [vmem:[%s3 + $0x178] sm:$0xff]
        %v806 = vld [vmem:[%s4] sm:$0x3]
        %v808 = vperm.slane %v806, 0
        %v809 = vperm.slane %v806, 1
        %v813 = vsel %vm705, %v753, 0
        %v816 = vsel %vm705, %v756, 0
        %818 = vmatpush.msra.mxu0 %v788
        %819 = vmatpush.msra.mxu0 %v786
        %820 = vmatpush.msra.mxu0 %v784
        %821 = vmatpush.msra.mxu0 %v782
        %822 = vmatpush.msra.mxu0 %v780
        %823 = vmatpush.msra.mxu0 %v778
        %824 = vmatpush.msra.mxu0 %v776
        %825 = vmatpush.msra.mxu0 %v774
        %826 = vmatpush.msra.mxu0 %v772
        %827 = vmatpush.msra.mxu0 %v770
        %828 = vmatpush.msra.mxu0 %v768
        %829 = vmatpush.msra.mxu0 %v766
        %830 = vmatpush.msra.mxu0 %v764
        %831 = vmatpush.msra.mxu0 %v762
        %832 = vmatpush.msra.mxu0 %v760
        %833 = vmatpush.msra.mxu0 %v758
        %834 = vmatmul.f32.gmra.mxu0 %v730
        %v835 = vpop.f32.mrf.mxu0
        %v836 = vadd.f32 %v808, %v835
        %837 = vmatmul.f32.gmra.mxu0 %v733
        %v838 = vpop.f32.mrf.mxu0
        %v839 = vadd.f32 %v808, %v838
        %840 = vdwg.mxu0
        %841 = vmatpush.msra.mxu0 0.0
        %842 = vmatpush.msra.mxu0 0.0
        %843 = vmatpush.msra.mxu0 0.0
        %844 = vmatpush.msra.mxu0 0.0
        %845 = vmatpush.msra.mxu0 0.0
        %846 = vmatpush.msra.mxu0 0.0
        %847 = vmatpush.msra.mxu0 0.0
        %848 = vmatpush.msra.mxu0 0.0
        %849 = vmatpush.msra.mxu0 %v804
        %850 = vmatpush.msra.mxu0 %v802
        %851 = vmatpush.msra.mxu0 %v800
        %852 = vmatpush.msra.mxu0 %v798
        %853 = vmatpush.msra.mxu0 %v796
        %854 = vmatpush.msra.mxu0 %v794
        %855 = vmatpush.msra.mxu0 %v792
        %856 = vmatpush.msra.mxu0 %v790
        %857 = vmatmul.f32.gmra.mxu0 %v813
        %v858 = vpop.f32.mrf.mxu0
        %v859 = vadd.f32 %v836, %v858
        %860 = vmatmul.f32.gmra.mxu0 %v816
        %v861 = vpop.f32.mrf.mxu0
        %v862 = vadd.f32 %v839, %v861
        %863 = vdwg.mxu0
        %864 = vmatpush.msra.mxu0 %v789
        %865 = vmatpush.msra.mxu0 %v787
        %866 = vmatpush.msra.mxu0 %v785
        %867 = vmatpush.msra.mxu0 %v783
        %868 = vmatpush.msra.mxu0 %v781
        %869 = vmatpush.msra.mxu0 %v779
        %870 = vmatpush.msra.mxu0 %v777
        %871 = vmatpush.msra.mxu0 %v775
        %872 = vmatpush.msra.mxu0 %v773
        %873 = vmatpush.msra.mxu0 %v771
        %874 = vmatpush.msra.mxu0 %v769
        %875 = vmatpush.msra.mxu0 %v767
        %876 = vmatpush.msra.mxu0 %v765
        %877 = vmatpush.msra.mxu0 %v763
        %878 = vmatpush.msra.mxu0 %v761
        %879 = vmatpush.msra.mxu0 %v759
        %880 = vmatmul.f32.gmra.mxu0 %v730
        %v881 = vpop.f32.mrf.mxu0
        %v882 = vadd.f32 %v809, %v881
        %883 = vmatmul.f32.gmra.mxu0 %v733
        %v884 = vpop.f32.mrf.mxu0
        %v885 = vadd.f32 %v809, %v884
        %886 = vdwg.mxu0
        %887 = vmatpush.msra.mxu0 0.0
        %888 = vmatpush.msra.mxu0 0.0
        %889 = vmatpush.msra.mxu0 0.0
        %890 = vmatpush.msra.mxu0 0.0
        %891 = vmatpush.msra.mxu0 0.0
        %892 = vmatpush.msra.mxu0 0.0
        %893 = vmatpush.msra.mxu0 0.0
        %894 = vmatpush.msra.mxu0 0.0
        %895 = vmatpush.msra.mxu0 %v805
        %896 = vmatpush.msra.mxu0 %v803
        %897 = vmatpush.msra.mxu0 %v801
        %898 = vmatpush.msra.mxu0 %v799
        %899 = vmatpush.msra.mxu0 %v797
        %900 = vmatpush.msra.mxu0 %v795
        %901 = vmatpush.msra.mxu0 %v793
        %902 = vmatpush.msra.mxu0 %v791
        %903 = vmatmul.f32.gmra.mxu0 %v813
        %v904 = vpop.f32.mrf.mxu0
        %v905 = vadd.f32 %v882, %v904
        %906 = vmatmul.f32.gmra.mxu0 %v816
        %v907 = vpop.f32.mrf.mxu0
        %v908 = vadd.f32 %v885, %v907
        %909 = vdwg.mxu0
        %v910 = vmax.f32 %v859, 0.0
        %v911 = vmax.f32 %v905, 0.0
        %v912 = vmax.f32 %v862, 0.0
        %v913 = vmax.f32 %v908, 0.0
        %914 = vst [vmem:[%s633] sm:$0xff] %v910
        %915 = vst [vmem:[%s633 + $0x8] sm:$0xff] %v911
        %916 = vst [vmem:[%s633 + $0x10] sm:$0xff] %v912
        %917 = vst [vmem:[%s633 + $0x18] sm:$0xff] %v913
        %v918 = vld [vmem:[%s5] sm:$0xff]
        %v920 = vsel %vm705, %v918, 0
        %922 = vmatpush.msra.mxu0 0.0
        %923 = vmatpush.msra.mxu0 0.0
        %924 = vmatpush.msra.mxu0 0.0
        %925 = vmatpush.msra.mxu0 0.0
        %926 = vmatpush.msra.mxu0 0.0
        %927 = vmatpush.msra.mxu0 0.0
        %928 = vmatpush.msra.mxu0 0.0
        %929 = vmatpush.msra.mxu0 0.0
        %930 = vmatpush.msra.mxu0 %v701
        %931 = vmatpush.msra.mxu0 %v699
        %932 = vmatpush.msra.mxu0 %v697
        %933 = vmatpush.msra.mxu0 %v695
        %934 = vmatpush.msra.mxu0 %v693
        %935 = vmatpush.msra.mxu0 %v691
        %936 = vmatpush.msra.mxu0 %v689
        %937 = vmatpush.msra.mxu0 %v687
        %938 = vmatmul.f32.gmra.mxu0 %v920
        %v939 = vpop.f32.mrf.mxu0
        %v940 = vadd.f32 0.0, %v939
        %941 = vdwg.mxu0
        %942 = vmatpush.msra.mxu0 0.0
        %943 = vmatpush.msra.mxu0 0.0
        %944 = vmatpush.msra.mxu0 0.0
        %945 = vmatpush.msra.mxu0 0.0
        %946 = vmatpush.msra.mxu0 0.0
        %947 = vmatpush.msra.mxu0 0.0
        %948 = vmatpush.msra.mxu0 0.0
        %949 = vmatpush.msra.mxu0 0.0
        %950 = vmatpush.msra.mxu0 %v702
        %951 = vmatpush.msra.mxu0 %v700
        %952 = vmatpush.msra.mxu0 %v698
        %953 = vmatpush.msra.mxu0 %v696
        %954 = vmatpush.msra.mxu0 %v694
        %955 = vmatpush.msra.mxu0 %v692
        %956 = vmatpush.msra.mxu0 %v690
        %957 = vmatpush.msra.mxu0 %v688
        %958 = vmatmul.f32.gmra.mxu0 %v920
        %v959 = vpop.f32.mrf.mxu0
        %v960 = vadd.f32 0.0, %v959
        %961 = vdwg.mxu0
        %v962 = vld [vmem:[#allocation7] sm:$0xff]
        %v963 = vld [vmem:[#allocation7 + $0x8] sm:$0xff]
        %v964 = vld [vmem:[#allocation7 + $0x10] sm:$0xff]
        %v965 = vld [vmem:[#allocation7 + $0x18] sm:$0xff]
        %v966 = vld [vmem:[#allocation7 + $0x20] sm:$0xff]
        %v967 = vld [vmem:[#allocation7 + $0x28] sm:$0xff]
        %v968 = vld [vmem:[#allocation7 + $0x30] sm:$0xff]
        %v969 = vld [vmem:[#allocation7 + $0x38] sm:$0xff]
        %v970 = vld [vmem:[#allocation7 + $0x40] sm:$0xff]
        %v971 = vld [vmem:[#allocation7 + $0x48] sm:$0xff]
        %v972 = vld [vmem:[#allocation7 + $0x50] sm:$0xff]
        %v973 = vld [vmem:[#allocation7 + $0x58] sm:$0xff]
        %v974 = vld [vmem:[#allocation7 + $0x60] sm:$0xff]
        %v975 = vld [vmem:[#allocation7 + $0x68] sm:$0xff]
        %v976 = vld [vmem:[#allocation7 + $0x70] sm:$0xff]
        %v977 = vld [vmem:[#allocation7 + $0x78] sm:$0xff]
        %v978 = vld [vmem:[#allocation7 + $0x80] sm:$0xff]
        %v979 = vld [vmem:[#allocation7 + $0x88] sm:$0xff]
        %v980 = vld [vmem:[#allocation7 + $0x90] sm:$0xff]
        %v981 = vld [vmem:[#allocation7 + $0x98] sm:$0xff]
        %v982 = vld [vmem:[#allocation7 + $0xa0] sm:$0xff]
        %v983 = vld [vmem:[#allocation7 + $0xa8] sm:$0xff]
        %v984 = vld [vmem:[#allocation7 + $0xb0] sm:$0xff]
        %v985 = vld [vmem:[#allocation7 + $0xb8] sm:$0xff]
        %v986 = vld [vmem:[%s7] sm:$0x1]
        %v988 = vperm.slane %v986, 0
        %v991 = vsel %vm705, %v960, 0
        %993 = vmatpush.msra.mxu0 %v977
        %994 = vmatpush.msra.mxu0 %v976
        %995 = vmatpush.msra.mxu0 %v975
        %996 = vmatpush.msra.mxu0 %v974
        %997 = vmatpush.msra.mxu0 %v973
        %998 = vmatpush.msra.mxu0 %v972
        %999 = vmatpush.msra.mxu0 %v971
        %1000 = vmatpush.msra.mxu0 %v970
        %1001 = vmatpush.msra.mxu0 %v969
        %1002 = vmatpush.msra.mxu0 %v968
        %1003 = vmatpush.msra.mxu0 %v967
        %1004 = vmatpush.msra.mxu0 %v966
        %1005 = vmatpush.msra.mxu0 %v965
        %1006 = vmatpush.msra.mxu0 %v964
        %1007 = vmatpush.msra.mxu0 %v963
        %1008 = vmatpush.msra.mxu0 %v962
        %1009 = vmatmul.f32.gmra.mxu0 %v940
        %v1010 = vpop.f32.mrf.mxu0
        %v1011 = vadd.f32 %v988, %v1010
        %1012 = vdwg.mxu0
        %1013 = vmatpush.msra.mxu0 0.0
        %1014 = vmatpush.msra.mxu0 0.0
        %1015 = vmatpush.msra.mxu0 0.0
        %1016 = vmatpush.msra.mxu0 0.0
        %1017 = vmatpush.msra.mxu0 0.0
        %1018 = vmatpush.msra.mxu0 0.0
        %1019 = vmatpush.msra.mxu0 0.0
        %1020 = vmatpush.msra.mxu0 0.0
        %1021 = vmatpush.msra.mxu0 %v985
        %1022 = vmatpush.msra.mxu0 %v984
        %1023 = vmatpush.msra.mxu0 %v983
        %1024 = vmatpush.msra.mxu0 %v982
        %1025 = vmatpush.msra.mxu0 %v981
        %1026 = vmatpush.msra.mxu0 %v980
        %1027 = vmatpush.msra.mxu0 %v979
        %1028 = vmatpush.msra.mxu0 %v978
        %1029 = vmatmul.f32.gmra.mxu0 %v991
        %v1030 = vpop.f32.mrf.mxu0
        %v1031 = vadd.f32 %v1011, %v1030
        %1032 = vdwg.mxu0
        %v1033 = vmax.f32 %v1031, 0.0
        %1034 = vst [vmem:[%s640] sm:$0xff] %v1033
        %v1035 = vld [vmem:[%s8] sm:$0xf]
        %v1037 = vsel %vm705, %v1035, 0
        %1039 = vmatpush.msra.mxu0 0.0
        %1040 = vmatpush.msra.mxu0 0.0
        %1041 = vmatpush.msra.mxu0 0.0
        %1042 = vmatpush.msra.mxu0 0.0
        %1043 = vmatpush.msra.mxu0 0.0
        %1044 = vmatpush.msra.mxu0 0.0
        %1045 = vmatpush.msra.mxu0 0.0
        %1046 = vmatpush.msra.mxu0 0.0
        %1047 = vmatpush.msra.mxu0 %v701
        %1048 = vmatpush.msra.mxu0 %v699
        %1049 = vmatpush.msra.mxu0 %v697
        %1050 = vmatpush.msra.mxu0 %v695
        %1051 = vmatpush.msra.mxu0 %v693
        %1052 = vmatpush.msra.mxu0 %v691
        %1053 = vmatpush.msra.mxu0 %v689
        %1054 = vmatpush.msra.mxu0 %v687
        %1055 = vmatmul.f32.gmra.mxu0 %v1037
        %v1056 = vpop.f32.mrf.mxu0
        %v1057 = vadd.f32 0.0, %v1056
        %1058 = vdwg.mxu0
        %1059 = vmatpush.msra.mxu0 0.0
        %1060 = vmatpush.msra.mxu0 0.0
        %1061 = vmatpush.msra.mxu0 0.0
        %1062 = vmatpush.msra.mxu0 0.0
        %1063 = vmatpush.msra.mxu0 0.0
        %1064 = vmatpush.msra.mxu0 0.0
        %1065 = vmatpush.msra.mxu0 0.0
        %1066 = vmatpush.msra.mxu0 0.0
        %1067 = vmatpush.msra.mxu0 %v702
        %1068 = vmatpush.msra.mxu0 %v700
        %1069 = vmatpush.msra.mxu0 %v698
        %1070 = vmatpush.msra.mxu0 %v696
        %1071 = vmatpush.msra.mxu0 %v694
        %1072 = vmatpush.msra.mxu0 %v692
        %1073 = vmatpush.msra.mxu0 %v690
        %1074 = vmatpush.msra.mxu0 %v688
        %1075 = vmatmul.f32.gmra.mxu0 %v1037
        %v1076 = vpop.f32.mrf.mxu0
        %v1077 = vadd.f32 0.0, %v1076
        %1078 = vdwg.mxu0
        %v1079 = vld [vmem:[%s9] sm:$0xff]
        %v1080 = vld [vmem:[%s9 + $0x8] sm:$0xff]
        %v1081 = vld [vmem:[%s9 + $0x10] sm:$0xff]
        %v1082 = vld [vmem:[%s9 + $0x18] sm:$0xff]
        %v1083 = vld [vmem:[%s9 + $0x20] sm:$0xff]
        %v1084 = vld [vmem:[%s9 + $0x28] sm:$0xff]
        %v1085 = vld [vmem:[%s9 + $0x30] sm:$0xff]
        %v1086 = vld [vmem:[%s9 + $0x38] sm:$0xff]
        %v1087 = vld [vmem:[%s9 + $0x40] sm:$0xff]
        %v1088 = vld [vmem:[%s9 + $0x48] sm:$0xff]
        %v1089 = vld [vmem:[%s9 + $0x50] sm:$0xff]
        %v1090 = vld [vmem:[%s9 + $0x58] sm:$0xff]
        %v1091 = vld [vmem:[%s9 + $0x60] sm:$0xff]
        %v1092 = vld [vmem:[%s9 + $0x68] sm:$0xff]
        %v1093 = vld [vmem:[%s9 + $0x70] sm:$0xff]
        %v1094 = vld [vmem:[%s9 + $0x78] sm:$0xff]
        %v1095 = vld [vmem:[%s9 + $0x80] sm:$0xff]
        %v1096 = vld [vmem:[%s9 + $0x88] sm:$0xff]
        %v1097 = vld [vmem:[%s9 + $0x90] sm:$0xff]
        %v1098 = vld [vmem:[%s9 + $0x98] sm:$0xff]
        %v1099 = vld [vmem:[%s9 + $0xa0] sm:$0xff]
        %v1100 = vld [vmem:[%s9 + $0xa8] sm:$0xff]
        %v1101 = vld [vmem:[%s9 + $0xb0] sm:$0xff]
        %v1102 = vld [vmem:[%s9 + $0xb8] sm:$0xff]
        %v1103 = vld [vmem:[%s10] sm:$0x1]
        %v1105 = vperm.slane %v1103, 0
        %v1108 = vsel %vm705, %v1077, 0
        %1110 = vmatpush.msra.mxu0 %v1094
        %1111 = vmatpush.msra.mxu0 %v1093
        %1112 = vmatpush.msra.mxu0 %v1092
        %1113 = vmatpush.msra.mxu0 %v1091
        %1114 = vmatpush.msra.mxu0 %v1090
        %1115 = vmatpush.msra.mxu0 %v1089
        %1116 = vmatpush.msra.mxu0 %v1088
        %1117 = vmatpush.msra.mxu0 %v1087
        %1118 = vmatpush.msra.mxu0 %v1086
        %1119 = vmatpush.msra.mxu0 %v1085
        %1120 = vmatpush.msra.mxu0 %v1084
        %1121 = vmatpush.msra.mxu0 %v1083
        %1122 = vmatpush.msra.mxu0 %v1082
        %1123 = vmatpush.msra.mxu0 %v1081
        %1124 = vmatpush.msra.mxu0 %v1080
        %1125 = vmatpush.msra.mxu0 %v1079
        %1126 = vmatmul.f32.gmra.mxu0 %v1057
        %v1127 = vpop.f32.mrf.mxu0
        %v1128 = vadd.f32 %v1105, %v1127
        %1129 = vdwg.mxu0
        %1130 = vmatpush.msra.mxu0 0.0
        %1131 = vmatpush.msra.mxu0 0.0
        %1132 = vmatpush.msra.mxu0 0.0
        %1133 = vmatpush.msra.mxu0 0.0
        %1134 = vmatpush.msra.mxu0 0.0
        %1135 = vmatpush.msra.mxu0 0.0
        %1136 = vmatpush.msra.mxu0 0.0
        %1137 = vmatpush.msra.mxu0 0.0
        %1138 = vmatpush.msra.mxu0 %v1102
        %1139 = vmatpush.msra.mxu0 %v1101
        %1140 = vmatpush.msra.mxu0 %v1100
        %1141 = vmatpush.msra.mxu0 %v1099
        %1142 = vmatpush.msra.mxu0 %v1098
        %1143 = vmatpush.msra.mxu0 %v1097
        %1144 = vmatpush.msra.mxu0 %v1096
        %1145 = vmatpush.msra.mxu0 %v1095
        %1146 = vmatmul.f32.gmra.mxu0 %v1108
        %v1147 = vpop.f32.mrf.mxu0
        %v1148 = vadd.f32 %v1128, %v1147
        %1149 = vdwg.mxu0
        %v1150 = vmax.f32 %v1148, 0.0
        %vm1151 = vcmask 519168
        %1152 = vst.msk [vmem:[%s647] sm:$0xf] %vm1151, %v1150
        %v1153 = vld [vmem:[%s11] sm:$0x3]
        %v1155 = vsel %vm705, %v1153, 0
        %1157 = vmatpush.msra.mxu0 0.0
        %1158 = vmatpush.msra.mxu0 0.0
        %1159 = vmatpush.msra.mxu0 0.0
        %1160 = vmatpush.msra.mxu0 0.0
        %1161 = vmatpush.msra.mxu0 0.0
        %1162 = vmatpush.msra.mxu0 0.0
        %1163 = vmatpush.msra.mxu0 0.0
        %1164 = vmatpush.msra.mxu0 0.0
        %1165 = vmatpush.msra.mxu0 %v701
        %1166 = vmatpush.msra.mxu0 %v699
        %1167 = vmatpush.msra.mxu0 %v697
        %1168 = vmatpush.msra.mxu0 %v695
        %1169 = vmatpush.msra.mxu0 %v693
        %1170 = vmatpush.msra.mxu0 %v691
        %1171 = vmatpush.msra.mxu0 %v689
        %1172 = vmatpush.msra.mxu0 %v687
        %1173 = vmatmul.f32.gmra.mxu0 %v1155
        %v1174 = vpop.f32.mrf.mxu0
        %v1175 = vadd.f32 0.0, %v1174
        %1176 = vdwg.mxu0
        %1177 = vmatpush.msra.mxu0 0.0
        %1178 = vmatpush.msra.mxu0 0.0
        %1179 = vmatpush.msra.mxu0 0.0
        %1180 = vmatpush.msra.mxu0 0.0
        %1181 = vmatpush.msra.mxu0 0.0
        %1182 = vmatpush.msra.mxu0 0.0
        %1183 = vmatpush.msra.mxu0 0.0
        %1184 = vmatpush.msra.mxu0 0.0
        %1185 = vmatpush.msra.mxu0 %v702
        %1186 = vmatpush.msra.mxu0 %v700
        %1187 = vmatpush.msra.mxu0 %v698
        %1188 = vmatpush.msra.mxu0 %v696
        %1189 = vmatpush.msra.mxu0 %v694
        %1190 = vmatpush.msra.mxu0 %v692
        %1191 = vmatpush.msra.mxu0 %v690
        %1192 = vmatpush.msra.mxu0 %v688
        %1193 = vmatmul.f32.gmra.mxu0 %v1155
        %v1194 = vpop.f32.mrf.mxu0
        %v1195 = vadd.f32 0.0, %v1194
        %1196 = vdwg.mxu0
        %v1197 = vld [vmem:[%s12] sm:$0xff]
        %v1198 = vld [vmem:[%s12 + $0x8] sm:$0xff]
        %v1199 = vld [vmem:[%s12 + $0x10] sm:$0xff]
        %v1200 = vld [vmem:[%s12 + $0x18] sm:$0xff]
        %v1201 = vld [vmem:[%s12 + $0x20] sm:$0xff]
        %v1202 = vld [vmem:[%s12 + $0x28] sm:$0xff]
        %v1203 = vld [vmem:[%s12 + $0x30] sm:$0xff]
        %v1204 = vld [vmem:[%s12 + $0x38] sm:$0xff]
        %v1205 = vld [vmem:[%s12 + $0x40] sm:$0xff]
        %v1206 = vld [vmem:[%s12 + $0x48] sm:$0xff]
        %v1207 = vld [vmem:[%s12 + $0x50] sm:$0xff]
        %v1208 = vld [vmem:[%s12 + $0x58] sm:$0xff]
        %v1209 = vld [vmem:[%s12 + $0x60] sm:$0xff]
        %v1210 = vld [vmem:[%s12 + $0x68] sm:$0xff]
        %v1211 = vld [vmem:[%s12 + $0x70] sm:$0xff]
        %v1212 = vld [vmem:[%s12 + $0x78] sm:$0xff]
        %v1213 = vld [vmem:[%s12 + $0x80] sm:$0xff]
        %v1214 = vld [vmem:[%s12 + $0x88] sm:$0xff]
        %v1215 = vld [vmem:[%s12 + $0x90] sm:$0xff]
        %v1216 = vld [vmem:[%s12 + $0x98] sm:$0xff]
        %v1217 = vld [vmem:[%s12 + $0xa0] sm:$0xff]
        %v1218 = vld [vmem:[%s12 + $0xa8] sm:$0xff]
        %v1219 = vld [vmem:[%s12 + $0xb0] sm:$0xff]
        %v1220 = vld [vmem:[%s12 + $0xb8] sm:$0xff]
        %v1221 = vld [vmem:[%s13] sm:$0x1]
        %v1223 = vperm.slane %v1221, 0
        %v1226 = vsel %vm705, %v1195, 0
        %1228 = vmatpush.msra.mxu0 %v1212
        %1229 = vmatpush.msra.mxu0 %v1211
        %1230 = vmatpush.msra.mxu0 %v1210
        %1231 = vmatpush.msra.mxu0 %v1209
        %1232 = vmatpush.msra.mxu0 %v1208
        %1233 = vmatpush.msra.mxu0 %v1207
        %1234 = vmatpush.msra.mxu0 %v1206
        %1235 = vmatpush.msra.mxu0 %v1205
        %1236 = vmatpush.msra.mxu0 %v1204
        %1237 = vmatpush.msra.mxu0 %v1203
        %1238 = vmatpush.msra.mxu0 %v1202
        %1239 = vmatpush.msra.mxu0 %v1201
        %1240 = vmatpush.msra.mxu0 %v1200
        %1241 = vmatpush.msra.mxu0 %v1199
        %1242 = vmatpush.msra.mxu0 %v1198
        %1243 = vmatpush.msra.mxu0 %v1197
        %1244 = vmatmul.f32.gmra.mxu0 %v1175
        %v1245 = vpop.f32.mrf.mxu0
        %v1246 = vadd.f32 %v1223, %v1245
        %1247 = vdwg.mxu0
        %1248 = vmatpush.msra.mxu0 0.0
        %1249 = vmatpush.msra.mxu0 0.0
        %1250 = vmatpush.msra.mxu0 0.0
        %1251 = vmatpush.msra.mxu0 0.0
        %1252 = vmatpush.msra.mxu0 0.0
        %1253 = vmatpush.msra.mxu0 0.0
        %1254 = vmatpush.msra.mxu0 0.0
        %1255 = vmatpush.msra.mxu0 0.0
        %1256 = vmatpush.msra.mxu0 %v1220
        %1257 = vmatpush.msra.mxu0 %v1219
        %1258 = vmatpush.msra.mxu0 %v1218
        %1259 = vmatpush.msra.mxu0 %v1217
        %1260 = vmatpush.msra.mxu0 %v1216
        %1261 = vmatpush.msra.mxu0 %v1215
        %1262 = vmatpush.msra.mxu0 %v1214
        %1263 = vmatpush.msra.mxu0 %v1213
        %1264 = vmatmul.f32.gmra.mxu0 %v1226
        %v1265 = vpop.f32.mrf.mxu0
        %v1266 = vadd.f32 %v1246, %v1265
        %1267 = vdwg.mxu0
        %v1268 = vmax.f32 %v1266, 0.0
        %vm1269 = vcmask 254976
        %1270 = vst.msk [vmem:[%s654] sm:$0x3] %vm1269, %v1268
        %s1271 = sand.u32 %s356, 1
        %s1272 = scalar_lea.sflag [#allocation4], %s1271
        %s1273 = sand.u32 %s356, 1
        %s1274 = smul.addr %s1273, 32
        %s1275 = scalar_lea.vmem [#allocation8], %s1274
        %s1276 = sand.u32 %s44, 1
        %s1277 = scalar_lea.sflag [#allocation10], %s1276
        %s1278 = sand.u32 %s382, 1
        %s1279 = smul.addr %s1278, 8
        %s1280 = scalar_lea.vmem [#allocation9], %s1279
        %s1281 = sand.u32 %s44, 1
        %s1282 = scalar_lea.sflag [#allocation10], %s1281
        %s1283 = sand.u32 %s408, 1
        %s1284 = smul.addr %s1283, 4
        %s1285 = scalar_lea.vmem [#allocation11], %s1284
        %s1286 = sand.u32 %s434, 1
        %s1287 = scalar_lea.sflag [#allocation13], %s1286
        %s1288 = sand.u32 %s434, 1
        %s1289 = smul.addr %s1288, 2
        %s1290 = scalar_lea.vmem [#allocation12], %s1289
        // Predicated region
        $region89: #{tpu_custom_call.1} parent=75 // pred_check
          %p1291 = pneg %p366
        $region90: #{tpu_custom_call.1} parent=75 // pred_check_branch
          %1293 = sbr.rel (%p1291) target = $region92
        $region91: #{tpu_custom_call.1} parent=75 // pred_region
          %1295 = vsyncadd %s1272, 0
          %s1296 = smul.addr %s44, 4
          %s1297 = smul.addr %s1296, 8
          %s1298 = scalar_lea.hbm %s14, %s1297
          %s1299 = sshll.u32 %s1275, 4
          %s1300 = int_to_ptr.vmem [resolvable:$true] %s1299
          %s1301 = sshll.u32 %s1298, 4
          %s1302 = int_to_ptr.hbm [resolvable:$true] %s1301
          %1307 = dma.vmem_to_hbm [thread:$0]  %s1300, 512, %s1302, %s1272, 256, 256, 16
        $region92: #{tpu_custom_call.1} parent=75 // pred_fallthru
          _
        // Predicated region
        $region93: #{tpu_custom_call.1} parent=75 // pred_check
          %p1308 = pneg %p392
        $region94: #{tpu_custom_call.1} parent=75 // pred_check_branch
          %1310 = sbr.rel (%p1308) target = $region96
        $region95: #{tpu_custom_call.1} parent=75 // pred_region
          %1312 = vsyncadd %s1277, 0
          %s1313 = smul.addr %s44, 8
          %s1314 = scalar_lea.hbm %s15, %s1313
          %s1316 = sshll.u32 %s1280, 4
          %s1317 = int_to_ptr.vmem [resolvable:$true] %s1316
          %s1318 = sshll.u32 %s1314, 4
          %s1319 = int_to_ptr.hbm [resolvable:$true] %s1318
          %1321 = dma.vmem_to_hbm [thread:$0]  %s1317, 128, %s1319, %s1277
        $region96: #{tpu_custom_call.1} parent=75 // pred_fallthru
          _
        // Predicated region
        $region97: #{tpu_custom_call.1} parent=75 // pred_check
          %p1322 = pneg %p418
        $region98: #{tpu_custom_call.1} parent=75 // pred_check_branch
          %1324 = sbr.rel (%p1322) target = $region100
        $region99: #{tpu_custom_call.1} parent=75 // pred_region
          %1326 = vsyncadd %s1282, 0
          %s1327 = smul.addr %s44, 4
          %s1328 = scalar_lea.hbm %s16, %s1327
          %s1330 = sshll.u32 %s1285, 4
          %s1331 = int_to_ptr.vmem [resolvable:$true] %s1330
          %s1332 = sshll.u32 %s1328, 4
          %s1333 = int_to_ptr.hbm [resolvable:$true] %s1332
          %1335 = dma.vmem_to_hbm [thread:$0]  %s1331, 64, %s1333, %s1282
        $region100: #{tpu_custom_call.1} parent=75 // pred_fallthru
          _
        // Predicated region
        $region101: #{tpu_custom_call.1} parent=75 // pred_check
          %p1336 = pneg %p444
        $region102: #{tpu_custom_call.1} parent=75 // pred_check_branch
          %1338 = sbr.rel (%p1336) target = $region104
        $region103: #{tpu_custom_call.1} parent=75 // pred_region
          %1340 = vsyncadd %s1287, 0
          %s1341 = smul.addr %s44, 2
          %s1342 = scalar_lea.hbm %s17, %s1341
          %s1344 = sshll.u32 %s1290, 4
          %s1345 = int_to_ptr.vmem [resolvable:$true] %s1344
          %s1346 = sshll.u32 %s1342, 4
          %s1347 = int_to_ptr.hbm [resolvable:$true] %s1346
          %1349 = dma.vmem_to_hbm [thread:$0]  %s1345, 32, %s1347, %s1287
        $region104: #{tpu_custom_call.1} parent=75 // pred_fallthru
          _
      $region76: #{tpu_custom_call.1} parent=5 // pred_fallthru
        _
      %p1350 = scmp.le.s32.totalorder 2, %s39
      // Predicated region
      $region105: #{tpu_custom_call.1} parent=5 // pred_check
        %p1351 = pneg %p1350
      $region106: #{tpu_custom_call.1} parent=5 // pred_check_branch
        %1353 = sbr.rel (%p1351) target = $region108
      $region107: #{tpu_custom_call.1} parent=5 // pred_region
        %s1354 = ssub.s32 %s39, 2
        // Predicated region
        $region109: #{tpu_custom_call.1} parent=107 // pred_check
          %p1355 = pneg %p372
        $region110: #{tpu_custom_call.1} parent=107 // pred_check_branch
          %1357 = sbr.rel (%p1355) target = $region112
        $region111: #{tpu_custom_call.1} parent=107 // pred_region
          %s1358 = sand.u32 %s357, 1
          %s1359 = scalar_lea.sflag [#allocation4], %s1358
          %s1360 = sand.u32 %s357, 1
          %s1361 = smul.addr %s1360, 32
          %s1362 = scalar_lea.vmem [#allocation8], %s1361
          %1364 = dma.done %s1359, 512
        $region112: #{tpu_custom_call.1} parent=107 // pred_fallthru
          _
        // Predicated region
        $region113: #{tpu_custom_call.1} parent=107 // pred_check
          %p1365 = pneg %p398
        $region114: #{tpu_custom_call.1} parent=107 // pred_check_branch
          %1367 = sbr.rel (%p1365) target = $region116
        $region115: #{tpu_custom_call.1} parent=107 // pred_region
          %s1368 = sand.u32 %s45, 1
          %s1369 = scalar_lea.sflag [#allocation10], %s1368
          %s1370 = sand.u32 %s383, 1
          %s1371 = smul.addr %s1370, 8
          %s1372 = scalar_lea.vmem [#allocation9], %s1371
          %1374 = dma.done %s1369, 128
        $region116: #{tpu_custom_call.1} parent=107 // pred_fallthru
          _
        // Predicated region
        $region117: #{tpu_custom_call.1} parent=107 // pred_check
          %p1375 = pneg %p424
        $region118: #{tpu_custom_call.1} parent=107 // pred_check_branch
          %1377 = sbr.rel (%p1375) target = $region120
        $region119: #{tpu_custom_call.1} parent=107 // pred_region
          %s1378 = sand.u32 %s45, 1
          %s1379 = scalar_lea.sflag [#allocation10], %s1378
          %s1380 = sand.u32 %s409, 1
          %s1381 = smul.addr %s1380, 4
          %s1382 = scalar_lea.vmem [#allocation11], %s1381
          %1384 = dma.done %s1379, 64
        $region120: #{tpu_custom_call.1} parent=107 // pred_fallthru
          _
        // Predicated region
        $region121: #{tpu_custom_call.1} parent=107 // pred_check
          %p1385 = pneg %p450
        $region122: #{tpu_custom_call.1} parent=107 // pred_check_branch
          %1387 = sbr.rel (%p1385) target = $region124
        $region123: #{tpu_custom_call.1} parent=107 // pred_region
          %s1388 = sand.u32 %s435, 1
          %s1389 = scalar_lea.sflag [#allocation13], %s1388
          %s1390 = sand.u32 %s435, 1
          %s1391 = smul.addr %s1390, 2
          %s1392 = scalar_lea.vmem [#allocation12], %s1391
          %1394 = dma.done %s1389, 32
        $region124: #{tpu_custom_call.1} parent=107 // pred_fallthru
          _
      $region108: #{tpu_custom_call.1} parent=5 // pred_fallthru
        _
    $region6: #{tpu_custom_call.1} parent=1 // loop_footer
      %s43 = sadd.s32 1, %s39
    $region7: #{tpu_custom_call.1} parent=1 // loop_footer_branch
      %38 = sbr.rel target = $region3
    $region8: #{tpu_custom_call.1} parent=1 // loop_exit
      _
    %1395 = vsyncpa [#allocation3], 1
    %s1396 = scalar_lea.sflag [#allocation3], 1
    %1397 = vsyncpa %s1396, 1
    %1398 = vsyncpa [#allocation6], 1
    %s1399 = scalar_lea.sflag [#allocation6], 1
    %1400 = vsyncpa %s1399, 1
    %1401 = vsyncpa [#allocation4], 1
    %s1402 = scalar_lea.sflag [#allocation4], 1
    %1403 = vsyncpa %s1402, 1
    %1404 = vsyncpa [#allocation10], 1
    %s1405 = scalar_lea.sflag [#allocation10], 1
    %1406 = vsyncpa %s1405, 1
    %1407 = vsyncpa [#allocation13], 1
    %s1408 = scalar_lea.sflag [#allocation13], 1
    %1409 = vsyncpa %s1408, 1

</llo_original>
